<compile_context>
chip_gen: v5e
topology: v5e:2x2
jax: 0.10.0
libtpu: 0.0.40
codegen_flags: <defaults>
</compile_context>

<pallas_src>
import functools

import jax
import jax.numpy as jnp
from jax.experimental import pallas as pl
from jax.experimental.pallas import tpu as pltpu


# ----------------------------------------------------------------------------------
# Fused Pallas kernel: controlnet + transformer forward for one (batch, HW-tile)
# ----------------------------------------------------------------------------------
def _fused_forward_kernel(patches_ref, temb_ref, keff_ref, veff_t_ref,
                          w_conv_t_ref, w_ctrl_out_t_ref,
                          w_mlp1_t_ref, w_mlp2_t_ref, w_out_t_ref,
                          out_ref, *, D):
    f32 = jnp.float32
    bf16 = jnp.bfloat16

    # ---- fused 3x3-conv matmul: Wconv^T @ [im2col(c); im2col(hs)]  (bf16 -> f32) ----
    conv = jnp.dot(w_conv_t_ref[...], patches_ref[0],
                   preferred_element_type=f32)                    # (2D, tm)
    ctrl_sum = conv[:D]       # cond_feat + lat_feat               (D, tm)
    tr_conv = conv[D:]        # transformer conv-in features       (D, tm)

    # ---- hoisted timestep embeddings, broadcast over lanes ----
    temb = temb_ref[0]                                            # (2D, 1) f32
    temb_ctrl = temb[:D]                                          # (D, 1)
    temb_tr = temb[D:]                                            # (D, 1)

    # ---- controlnet trunk: + temb, SiLU (f32), out-proj (cond_scale folded in) ----
    h = ctrl_sum + temb_ctrl
    h = h * jax.nn.sigmoid(h)
    ctrl_out = jnp.dot(w_ctrl_out_t_ref[...], h.astype(bf16),
                       preferred_element_type=f32)                # (D, tm)

    # ---- transformer: conv-in + temb + mid_block_additional_residual ----
    x = tr_conv + temb_tr + ctrl_out                              # (D, tm) f32

    # ---- cross-attention; Wq folded into K_eff, Wo folded into V_eff^T ----
    s = jnp.dot(keff_ref[0], x.astype(bf16),
                preferred_element_type=f32)                       # (S, tm)
    m = jnp.max(s, axis=0, keepdims=True)                         # (1, tm)
    p = jnp.exp(s - m)                                            # (S, tm) f32
    denom = jnp.sum(p, axis=0, keepdims=True)                     # (1, tm)
    attn = jnp.dot(veff_t_ref[0], p.astype(bf16),
                   preferred_element_type=f32)                    # (D, tm)
    x = x + attn * (1.0 / denom)                                  # exact normalization

    # ---- feed-forward MLP (SiLU in f32) with residual ----
    h1 = jnp.dot(w_mlp1_t_ref[...], x.astype(bf16),
                 preferred_element_type=f32)                      # (4D, tm)
    h1 = h1 * jax.nn.sigmoid(h1)
    x = x + jnp.dot(w_mlp2_t_ref[...], h1.astype(bf16),
                    preferred_element_type=f32)                   # (D, tm)

    # ---- conv-out: channel-major result, lane-dense store (lanes = tm) ----
    out_ref[0] = jnp.dot(w_out_t_ref[...], x.astype(bf16),
                         preferred_element_type=f32).astype(out_ref.dtype)  # (Cl, tm)


# ----------------------------------------------------------------------------------
# Plain-JAX glue
# ----------------------------------------------------------------------------------
def sinusoidal_timestep_embedding(t, dim):
    half = dim // 2
    freqs = jnp.exp(-jnp.log(10000.0) * jnp.arange(half, dtype=jnp.float32) / half)
    args = t.astype(jnp.float32)[:, None] * freqs[None, :]
    return jnp.concatenate([jnp.sin(args), jnp.cos(args)], axis=-1)  # [B, dim]


def im2col_3x3_nchw(x):
    """x: [B,C,H,W] NCHW, 3x3 / padding=1 -> [B, 9*C, H*W] channel-major patches
    ((dh,dw)-major, c-minor row ordering — matches the (9*C, D) conv weight rows)."""
    B, C, H, W = x.shape
    xp = jnp.pad(x, ((0, 0), (0, 0), (1, 1), (1, 1)))
    cols = [xp[:, :, dh:dh + H, dw:dw + W] for dh in range(3) for dw in range(3)]
    return jnp.concatenate(cols, axis=1).reshape(B, 9 * C, H * W)


def _pick_tile(hw, batch, per_token_bytes, fixed_bytes, budget_bytes):
    """Largest tm with tm % 128 == 0 and hw % tm == 0 that fits the VMEM budget,
    preferring an even total grid-step count (keeps both v7x TensorCores busy)."""
    if hw < 128:
        return hw                       # whole-row block: last dim == full array dim
    divs = [t for t in range(128, hw + 1, 128) if hw % t == 0]
    if not divs:
        # TODO(synk): pad HW up to a multiple of 128 for production shapes so the
        #             output store stays lane-dense; whole-row fallback for now.
        return hw
    fit = [t for t in divs if fixed_bytes + t * per_token_bytes <= budget_bytes] or [min(divs)]
    even = [t for t in fit if (batch * (hw // t)) % 2 == 0]
    return max(even or fit)


def init_params(key, c_lat=4, c_cond=4, d=32, d_text=32):
    def w(key, shape):
        fan_in = shape[0]
        return (jax.random.normal(key, shape, jnp.float32) / jnp.sqrt(fan_in)).astype(jnp.float32)

    keys = jax.random.split(key, 16)
    return dict(
        # ---- controlnet ----
        ctrl_cond_conv_w=w(keys[0], (9 * c_cond, d)),
        ctrl_lat_conv_w=w(keys[1], (9 * c_lat, d)),
        ctrl_time_w1=w(keys[2], (d, d)),
        ctrl_time_w2=w(keys[3], (d, d)),
        ctrl_out_w=w(keys[4], (d, d)),
        # ---- transformer ----
        tr_conv_in_w=w(keys[5], (9 * c_lat, d)),
        tr_time_w1=w(keys[6], (d, d)),
        tr_time_w2=w(keys[7], (d, d)),
        wq=w(keys[8], (d, d)),
        wk=w(keys[9], (d_text, d)),
        wv=w(keys[10], (d_text, d)),
        wo=w(keys[11], (d, d)),
        mlp_w1=w(keys[12], (d, 4 * d)),
        mlp_w2=w(keys[13], (4 * d, d)),
        tr_out_w=w(keys[14], (d, c_lat)),
    )


# ----------------------------------------------------------------------------------
# controlnet_wrapper.forward
# ----------------------------------------------------------------------------------
def controlnet_wrapper_forward(params, hidden_states, timestep, *, encoder_hidden_states, c,
                               conditioning_scale=1.0):
    """hidden_states / c : NCHW, timestep: [B], encoder_hidden_states: [B,S,D_text]."""
    assert c is not None
    f32, bf16 = jnp.float32, jnp.bfloat16
    B, Cl, H, W = hidden_states.shape
    D = params["wq"].shape[0]
    HW = H * W
    S = encoder_hidden_states.shape[1]

    # channel-major im2col directly from NCHW (no layout transpose), shared by the
    # controlnet lat-conv and the transformer conv-in; matmul operands in bf16.
    # TODO(synk): for real image sizes, replace the HBM im2col with an in-kernel 3x3
    #             halo gather (9 shifted K-slice matmuls) so the 9x channel expansion
    #             never hits HBM.
    patches = jnp.concatenate([im2col_3x3_nchw(c.astype(bf16)),
                               im2col_3x3_nchw(hidden_states.astype(bf16))],
                              axis=1)                                     # (B, 2*9*C, HW)
    Kp = patches.shape[1]

    # ---- hoisted per-batch work (invariant across HW tiles) ----
    # both timestep MLPs in plain JAX -> (B, 2D, 1) channel-major broadcast block
    e = sinusoidal_timestep_embedding(timestep, D)                        # (B, D)

    def time_mlp(w1, w2):
        th = e @ w1
        return (th * jax.nn.sigmoid(th)) @ w2

    temb = jnp.concatenate([time_mlp(params["ctrl_time_w1"], params["ctrl_time_w2"]),
                            time_mlp(params["tr_time_w1"], params["tr_time_w2"])],
                           axis=-1)[:, :, None].astype(f32)               # (B, 2D, 1)

    # cross-attention K/V hoisted per batch; Wq (with attn scale) folded into K and
    # Wo folded into V:  softmax(x·Wq·K^T)·V·Wo  ==  softmax(x·K_eff^T)·V_eff
    enc = encoder_hidden_states.astype(f32)
    attn_scale = 1.0 / (D ** 0.5)
    k_eff = ((enc @ params["wk"]) @ params["wq"].T * attn_scale).astype(bf16)      # (B, S, D)
    v_eff_t = jnp.transpose((enc @ params["wv"]) @ params["wo"], (0, 2, 1)).astype(bf16)  # (B, D, S)

    # ---- fused + transposed (channel-major) weights, cast to bf16 once ----
    k_cond = params["ctrl_cond_conv_w"].shape[0]
    w_conv = jnp.concatenate([
        jnp.concatenate([params["ctrl_cond_conv_w"],
                         jnp.zeros((k_cond, D), f32)], axis=1),
        jnp.concatenate([params["ctrl_lat_conv_w"],
                         params["tr_conv_in_w"]], axis=1),
    ], axis=0)                                                            # (2*9*C, 2D)
    w_conv_t = w_conv.T.astype(bf16)                                      # (2D, Kp)
    w_ctrl_out_t = (params["ctrl_out_w"] * conditioning_scale).T.astype(bf16)  # (D, D)
    w_mlp1_t = params["mlp_w1"].T.astype(bf16)                            # (4D, D)
    w_mlp2_t = params["mlp_w2"].T.astype(bf16)                            # (D, 4D)
    w_out_t = params["tr_out_w"].T.astype(bf16)                           # (Cl, D)
    # TODO(synk): at production D, mark these constant-index weight specs
    #             pipeline_mode=pl.Buffered(1) to halve their VMEM on v7x.

    # ---- VMEM-budget-driven tile size (v7x-safe: 64 MiB physical VMEM) ----
    per_token = (2 * Kp * 2                       # patches block, bf16, double-buffered
                 + 2 * Cl * 4                     # output block, f32, double-buffered
                 + (12 * D + 2 * S + Cl) * 4)     # live f32 intermediates (upper bound)
    fixed = (4 * (w_conv_t.size + w_ctrl_out_t.size + w_mlp1_t.size + w_mlp2_t.size
                  + w_out_t.size + 2 * S * D)     # bf16 weights + K/V, double-buffered
             + 8 * 2 * D                          # temb block
             + (2 << 20))                         # slack for spills / compiler scratch
    tm = _pick_tile(HW, B, per_token, fixed, budget_bytes=24 << 20)
    grid = (B, HW // tm)

    def const2d(wt):
        return pl.BlockSpec(wt.shape, lambda b, i: (0, 0))

    kernel = functools.partial(_fused_forward_kernel, D=D)

    out = pl.pallas_call(
        kernel,
        out_shape=jax.ShapeDtypeStruct((B, Cl, HW), jnp.float32),
        grid=grid,
        in_specs=[
            pl.BlockSpec((1, Kp, tm), lambda b, i: (b, 0, i)),    # im2col patches (bf16)
            pl.BlockSpec((1, 2 * D, 1), lambda b, i: (b, 0, 0)),  # hoisted temb (f32)
            pl.BlockSpec((1, S, D), lambda b, i: (b, 0, 0)),      # K_eff (bf16)
            pl.BlockSpec((1, D, S), lambda b, i: (b, 0, 0)),      # V_eff^T (bf16)
            const2d(w_conv_t), const2d(w_ctrl_out_t),
            const2d(w_mlp1_t), const2d(w_mlp2_t), const2d(w_out_t),
        ],
        out_specs=pl.BlockSpec((1, Cl, tm), lambda b, i: (b, 0, i)),
        compiler_params=pltpu.CompilerParams(
            dimension_semantics=("parallel", "parallel"),
            vmem_limit_bytes=48 * 1024 * 1024),
    )(patches, temb, k_eff, v_eff_t,
      w_conv_t, w_ctrl_out_t, w_mlp1_t, w_mlp2_t, w_out_t)

    # channel-major kernel output -> NCHW is a pure metadata reshape (no transpose)
    return out.reshape(B, Cl, H, W)
    # TODO(synk): if the reference controlnet/transformer layers use bias=True, fold the
    #             biases into the fused weight concats (extra constant-1 patch row).


# ----------------------------------------------------------------------------------
if __name__ == "__main__":
    key = jax.random.PRNGKey(0)
    k_p, k_h, k_c, k_e = jax.random.split(key, 4)

    B, C, Hh, Ww = 2, 4, 16, 16
    S, D = 8, 32

    params = init_params(k_p, c_lat=C, c_cond=C, d=D, d_text=D)
    hidden_states = jax.random.normal(k_h, (B, C, Hh, Ww), jnp.float32)   # NCHW latents
    c_cond = jax.random.normal(k_c, (B, C, Hh, Ww), jnp.float32)          # controlnet_cond
    encoder_hidden_states = jax.random.normal(k_e, (B, S, D), jnp.float32)
    timestep = jnp.array([10.0, 500.0], jnp.float32)

    fwd = jax.jit(functools.partial(controlnet_wrapper_forward, params))
    out = fwd(hidden_states, timestep,
              encoder_hidden_states=encoder_hidden_states, c=c_cond)
    out = jax.block_until_ready(out)

    assert out.shape == (B, C, Hh, Ww), out.shape
    assert jnp.all(jnp.isfinite(out))
    print("KERNEL_OK")
</pallas_src>

<mosaic_0001>
module attributes {stable_mosaic.version = 11 : i64} {
  func.func @_fused_forward_kernel(%arg0: i32, %arg1: i32, %arg2: memref<1x72x256xbf16, #tpu.memory_space<vmem>>, %arg3: memref<1x64x1xf32, #tpu.memory_space<vmem>>, %arg4: memref<1x8x32xbf16, #tpu.memory_space<vmem>>, %arg5: memref<1x32x8xbf16, #tpu.memory_space<vmem>>, %arg6: memref<64x72xbf16, #tpu.memory_space<vmem>>, %arg7: memref<32x32xbf16, #tpu.memory_space<vmem>>, %arg8: memref<128x32xbf16, #tpu.memory_space<vmem>>, %arg9: memref<32x128xbf16, #tpu.memory_space<vmem>>, %arg10: memref<4x32xbf16, #tpu.memory_space<vmem>>, %arg11: memref<1x4x256xf32, #tpu.memory_space<vmem>>) attributes {dimension_semantics = [#tpu.dimension_semantics<parallel>, #tpu.dimension_semantics<parallel>], iteration_bounds = array<i64: 2, 1>, scalar_prefetch = 0 : i64, scratch_operands = 0 : i64, tpu.core_type = #tpu.core_type<tc>, window_params = [{transform_indices = @transform_0, window_bounds = array<i64: 1, 72, 256>}, {transform_indices = @transform_1, window_bounds = array<i64: 1, 64, 1>}, {transform_indices = @transform_2, window_bounds = array<i64: 1, 8, 32>}, {transform_indices = @transform_3, window_bounds = array<i64: 1, 32, 8>}, {pipeline_mode = #tpu.pipeline_mode<synchronous>, transform_indices = @transform_4, window_bounds = array<i64: 64, 72>}, {pipeline_mode = #tpu.pipeline_mode<synchronous>, transform_indices = @transform_5, window_bounds = array<i64: 32, 32>}, {pipeline_mode = #tpu.pipeline_mode<synchronous>, transform_indices = @transform_6, window_bounds = array<i64: 128, 32>}, {pipeline_mode = #tpu.pipeline_mode<synchronous>, transform_indices = @transform_7, window_bounds = array<i64: 32, 128>}, {pipeline_mode = #tpu.pipeline_mode<synchronous>, transform_indices = @transform_8, window_bounds = array<i64: 4, 32>}, {transform_indices = @transform_9, window_bounds = array<i64: 1, 4, 256>}]} {
    %c0 = arith.constant 0 : index
    %c0_0 = arith.constant 0 : index
    %0 = vector.load %arg6[%c0, %c0_0] : memref<64x72xbf16, #tpu.memory_space<vmem>>, vector<64x72xbf16>
    %c0_1 = arith.constant 0 : index
    %c0_2 = arith.constant 0 : index
    %c0_3 = arith.constant 0 : index
    %1 = vector.load %arg2[%c0_1, %c0_2, %c0_3] : memref<1x72x256xbf16, #tpu.memory_space<vmem>>, vector<1x72x256xbf16>
    %2 = vector.shape_cast %1 : vector<1x72x256xbf16> to vector<72x256xbf16>
    %cst = arith.constant dense<0.000000e+00> : vector<64x256xf32>
    %3 = tpu.matmul %0, %2, %cst {dimension_numbers = #tpu.dot_dimension_numbers<[1], [0], [0], [1], [0, 0, 1, 1], [], []>} : vector<64x72xbf16>, vector<72x256xbf16>, vector<64x256xf32> -> vector<64x256xf32>
    %4 = vector.extract_strided_slice %3 {offsets = [0, 0], sizes = [32, 256], strides = [1, 1]} : vector<64x256xf32> to vector<32x256xf32>
    %5 = vector.extract_strided_slice %3 {offsets = [32, 0], sizes = [32, 256], strides = [1, 1]} : vector<64x256xf32> to vector<32x256xf32>
    %c0_4 = arith.constant 0 : index
    %c0_5 = arith.constant 0 : index
    %c0_6 = arith.constant 0 : index
    %6 = vector.load %arg3[%c0_4, %c0_5, %c0_6] : memref<1x64x1xf32, #tpu.memory_space<vmem>>, vector<1x64x1xf32>
    %7 = vector.shape_cast %6 : vector<1x64x1xf32> to vector<64x1xf32>
    %8 = vector.extract_strided_slice %7 {offsets = [0, 0], sizes = [32, 1], strides = [1, 1]} : vector<64x1xf32> to vector<32x1xf32>
    %9 = vector.extract_strided_slice %7 {offsets = [32, 0], sizes = [32, 1], strides = [1, 1]} : vector<64x1xf32> to vector<32x1xf32>
    %10 = vector.broadcast %8 : vector<32x1xf32> to vector<32x256xf32>
    %11 = arith.addf %4, %10 : vector<32x256xf32>
    %12 = arith.negf %11 : vector<32x256xf32>
    %13 = math.exp %12 : vector<32x256xf32>
    %cst_7 = arith.constant 1.000000e+00 : f32
    %14 = vector.broadcast %cst_7 : f32 to vector<32x256xf32>
    %15 = arith.addf %14, %13 : vector<32x256xf32>
    %16 = arith.divf %14, %15 : vector<32x256xf32>
    %17 = arith.mulf %11, %16 : vector<32x256xf32>
    %c0_8 = arith.constant 0 : index
    %c0_9 = arith.constant 0 : index
    %18 = vector.load %arg7[%c0_8, %c0_9] : memref<32x32xbf16, #tpu.memory_space<vmem>>, vector<32x32xbf16>
    %19 = arith.truncf %17 : vector<32x256xf32> to vector<32x256xbf16>
    %cst_10 = arith.constant dense<0.000000e+00> : vector<32x256xf32>
    %20 = tpu.matmul %18, %19, %cst_10 {dimension_numbers = #tpu.dot_dimension_numbers<[1], [0], [0], [1], [0, 0, 1, 1], [], []>} : vector<32x32xbf16>, vector<32x256xbf16>, vector<32x256xf32> -> vector<32x256xf32>
    %21 = vector.broadcast %9 : vector<32x1xf32> to vector<32x256xf32>
    %22 = arith.addf %5, %21 : vector<32x256xf32>
    %23 = arith.addf %22, %20 : vector<32x256xf32>
    %c0_11 = arith.constant 0 : index
    %c0_12 = arith.constant 0 : index
    %c0_13 = arith.constant 0 : index
    %24 = vector.load %arg4[%c0_11, %c0_12, %c0_13] : memref<1x8x32xbf16, #tpu.memory_space<vmem>>, vector<1x8x32xbf16>
    %25 = vector.shape_cast %24 : vector<1x8x32xbf16> to vector<8x32xbf16>
    %26 = arith.truncf %23 : vector<32x256xf32> to vector<32x256xbf16>
    %cst_14 = arith.constant dense<0.000000e+00> : vector<8x256xf32>
    %27 = tpu.matmul %25, %26, %cst_14 {dimension_numbers = #tpu.dot_dimension_numbers<[1], [0], [0], [1], [0, 0, 1, 1], [], []>} : vector<8x32xbf16>, vector<32x256xbf16>, vector<8x256xf32> -> vector<8x256xf32>
    %cst_15 = arith.constant dense<0xFF800000> : vector<256xf32>
    %28 = vector.multi_reduction <maximumf>, %27, %cst_15 [0] : vector<8x256xf32> to vector<256xf32>
    %29 = vector.shape_cast %28 : vector<256xf32> to vector<1x256xf32>
    %30 = vector.broadcast %29 : vector<1x256xf32> to vector<8x256xf32>
    %31 = arith.subf %27, %30 : vector<8x256xf32>
    %32 = math.exp %31 : vector<8x256xf32>
    %cst_16 = arith.constant dense<0.000000e+00> : vector<256xf32>
    %33 = vector.multi_reduction <add>, %32, %cst_16 [0] : vector<8x256xf32> to vector<256xf32>
    %34 = vector.shape_cast %33 : vector<256xf32> to vector<1x256xf32>
    %c0_17 = arith.constant 0 : index
    %c0_18 = arith.constant 0 : index
    %c0_19 = arith.constant 0 : index
    %35 = vector.load %arg5[%c0_17, %c0_18, %c0_19] : memref<1x32x8xbf16, #tpu.memory_space<vmem>>, vector<1x32x8xbf16>
    %36 = vector.shape_cast %35 : vector<1x32x8xbf16> to vector<32x8xbf16>
    %37 = arith.truncf %32 : vector<8x256xf32> to vector<8x256xbf16>
    %cst_20 = arith.constant dense<0.000000e+00> : vector<32x256xf32>
    %38 = tpu.matmul %36, %37, %cst_20 {dimension_numbers = #tpu.dot_dimension_numbers<[1], [0], [0], [1], [0, 0, 1, 1], [], []>} : vector<32x8xbf16>, vector<8x256xbf16>, vector<32x256xf32> -> vector<32x256xf32>
    %cst_21 = arith.constant 1.000000e+00 : f32
    %39 = vector.broadcast %cst_21 : f32 to vector<1x256xf32>
    %40 = arith.divf %39, %34 : vector<1x256xf32>
    %41 = vector.broadcast %40 : vector<1x256xf32> to vector<32x256xf32>
    %42 = arith.mulf %38, %41 : vector<32x256xf32>
    %43 = arith.addf %23, %42 : vector<32x256xf32>
    %c0_22 = arith.constant 0 : index
    %c0_23 = arith.constant 0 : index
    %44 = vector.load %arg8[%c0_22, %c0_23] : memref<128x32xbf16, #tpu.memory_space<vmem>>, vector<128x32xbf16>
    %45 = arith.truncf %43 : vector<32x256xf32> to vector<32x256xbf16>
    %cst_24 = arith.constant dense<0.000000e+00> : vector<128x256xf32>
    %46 = tpu.matmul %44, %45, %cst_24 {dimension_numbers = #tpu.dot_dimension_numbers<[1], [0], [0], [1], [0, 0, 1, 1], [], []>} : vector<128x32xbf16>, vector<32x256xbf16>, vector<128x256xf32> -> vector<128x256xf32>
    %47 = arith.negf %46 : vector<128x256xf32>
    %48 = math.exp %47 : vector<128x256xf32>
    %cst_25 = arith.constant 1.000000e+00 : f32
    %49 = vector.broadcast %cst_25 : f32 to vector<128x256xf32>
    %50 = arith.addf %49, %48 : vector<128x256xf32>
    %51 = arith.divf %49, %50 : vector<128x256xf32>
    %52 = arith.mulf %46, %51 : vector<128x256xf32>
    %c0_26 = arith.constant 0 : index
    %c0_27 = arith.constant 0 : index
    %53 = vector.load %arg9[%c0_26, %c0_27] : memref<32x128xbf16, #tpu.memory_space<vmem>>, vector<32x128xbf16>
    %54 = arith.truncf %52 : vector<128x256xf32> to vector<128x256xbf16>
    %cst_28 = arith.constant dense<0.000000e+00> : vector<32x256xf32>
    %55 = tpu.matmul %53, %54, %cst_28 {dimension_numbers = #tpu.dot_dimension_numbers<[1], [0], [0], [1], [0, 0, 1, 1], [], []>} : vector<32x128xbf16>, vector<128x256xbf16>, vector<32x256xf32> -> vector<32x256xf32>
    %56 = arith.addf %43, %55 : vector<32x256xf32>
    %c0_29 = arith.constant 0 : index
    %c0_30 = arith.constant 0 : index
    %57 = vector.load %arg10[%c0_29, %c0_30] : memref<4x32xbf16, #tpu.memory_space<vmem>>, vector<4x32xbf16>
    %58 = arith.truncf %56 : vector<32x256xf32> to vector<32x256xbf16>
    %cst_31 = arith.constant dense<0.000000e+00> : vector<4x256xf32>
    %59 = tpu.matmul %57, %58, %cst_31 {dimension_numbers = #tpu.dot_dimension_numbers<[1], [0], [0], [1], [0, 0, 1, 1], [], []>} : vector<4x32xbf16>, vector<32x256xbf16>, vector<4x256xf32> -> vector<4x256xf32>
    %c0_32 = arith.constant 0 : index
    %c0_33 = arith.constant 0 : index
    %c0_34 = arith.constant 0 : index
    %60 = vector.load %arg11[%c0_32, %c0_33, %c0_34] : memref<1x4x256xf32, #tpu.memory_space<vmem>>, vector<1x4x256xf32>
    %61 = vector.shape_cast %60 : vector<1x4x256xf32> to vector<4x256xf32>
    %62 = vector.shape_cast %59 : vector<4x256xf32> to vector<1x4x256xf32>
    tpu.vector_store %arg11[%c0_32, %c0_33, %c0_34], %62 {strides = array<i32>} : memref<1x4x256xf32, #tpu.memory_space<vmem>>, vector<1x4x256xf32>,
    return
  }
  func.func @transform_0(%arg0: i32, %arg1: i32) -> (i32, i32, i32) {
    %c0_i32 = arith.constant 0 : i32
    %c0_i32_0 = arith.constant 0 : i32
    return %arg0, %c0_i32, %arg1 : i32, i32, i32
  }
  func.func @transform_1(%arg0: i32, %arg1: i32) -> (i32, i32, i32) {
    %c0_i32 = arith.constant 0 : i32
    %c0_i32_0 = arith.constant 0 : i32
    %c0_i32_1 = arith.constant 0 : i32
    return %arg0, %c0_i32, %c0_i32_0 : i32, i32, i32
  }
  func.func @transform_2(%arg0: i32, %arg1: i32) -> (i32, i32, i32) {
    %c0_i32 = arith.constant 0 : i32
    %c0_i32_0 = arith.constant 0 : i32
    %c0_i32_1 = arith.constant 0 : i32
    return %arg0, %c0_i32, %c0_i32_0 : i32, i32, i32
  }
  func.func @transform_3(%arg0: i32, %arg1: i32) -> (i32, i32, i32) {
    %c0_i32 = arith.constant 0 : i32
    %c0_i32_0 = arith.constant 0 : i32
    %c0_i32_1 = arith.constant 0 : i32
    return %arg0, %c0_i32, %c0_i32_0 : i32, i32, i32
  }
  func.func @transform_4(%arg0: i32, %arg1: i32) -> (i32, i32) {
    %c0_i32 = arith.constant 0 : i32
    %c0_i32_0 = arith.constant 0 : i32
    %c0_i32_1 = arith.constant 0 : i32
    return %c0_i32, %c0_i32_0 : i32, i32
  }
  func.func @transform_5(%arg0: i32, %arg1: i32) -> (i32, i32) {
    %c0_i32 = arith.constant 0 : i32
    %c0_i32_0 = arith.constant 0 : i32
    %c0_i32_1 = arith.constant 0 : i32
    return %c0_i32, %c0_i32_0 : i32, i32
  }
  func.func @transform_6(%arg0: i32, %arg1: i32) -> (i32, i32) {
    %c0_i32 = arith.constant 0 : i32
    %c0_i32_0 = arith.constant 0 : i32
    %c0_i32_1 = arith.constant 0 : i32
    return %c0_i32, %c0_i32_0 : i32, i32
  }
  func.func @transform_7(%arg0: i32, %arg1: i32) -> (i32, i32) {
    %c0_i32 = arith.constant 0 : i32
    %c0_i32_0 = arith.constant 0 : i32
    %c0_i32_1 = arith.constant 0 : i32
    return %c0_i32, %c0_i32_0 : i32, i32
  }
  func.func @transform_8(%arg0: i32, %arg1: i32) -> (i32, i32) {
    %c0_i32 = arith.constant 0 : i32
    %c0_i32_0 = arith.constant 0 : i32
    %c0_i32_1 = arith.constant 0 : i32
    return %c0_i32, %c0_i32_0 : i32, i32
  }
  func.func @transform_9(%arg0: i32, %arg1: i32) -> (i32, i32, i32) {
    %c0_i32 = arith.constant 0 : i32
    %c0_i32_0 = arith.constant 0 : i32
    return %arg0, %c0_i32, %arg1 : i32, i32, i32
  }
}

</mosaic_0001>

<llo_original>
// kernel: controlnet_wrapper_forward.1
$region0: #{controlnet_wrapper_forward.1}
  #allocation0 [shape = 'u32[]', space=smem, size = 0x4, offset = 0x4, fixed_abs, tag = 'smem constant byte address 0x4 - core index']
  #allocation1 [shape = 'u32[72,128]{1,0:T(1,128)}', space=vmem, size = 0x9000, scoped, tag = 'internal scratch']
  %s0 = inlined_call_operand.vmem [shape: bf16[2,72,256], index: 0, kind: input, shape index: {}]
  %s1 = inlined_call_operand.vmem [shape: f32[2,64,1], index: 1, kind: input, shape index: {}]
  %s2 = inlined_call_operand.vmem [shape: bf16[2,8,32], index: 2, kind: input, shape index: {}]
  %s3 = inlined_call_operand.vmem [shape: bf16[2,32,8], index: 3, kind: input, shape index: {}]
  %s4 = inlined_call_operand.vmem [shape: bf16[64,72], index: 4, kind: input, shape index: {}]
  %s5 = inlined_call_operand.vmem [shape: bf16[32,32], index: 5, kind: input, shape index: {}]
  %s6 = inlined_call_operand.vmem [shape: bf16[128,32], index: 6, kind: input, shape index: {}]
  %s7 = inlined_call_operand.vmem [shape: bf16[32,128], index: 7, kind: input, shape index: {}]
  %s8 = inlined_call_operand.vmem [shape: bf16[4,32], index: 8, kind: input, shape index: {}]
  %s9 = inlined_call_operand.vmem [shape: f32[2,4,256], index: 9, kind: output, shape index: {}]
  %s10 = sld [smem:[#allocation0]]
  $region69: #{controlnet_wrapper_forward.1} parent=0
    _
  %s12 = ssub.s32 1, %s10
  %s13 = scalar_select 0, %s12, %s10
  loop: start=0, step=1, limit=4
  $region2: #{controlnet_wrapper_forward.1} parent=0 // loop_pre_header
    _
  $region3: #{controlnet_wrapper_forward.1} parent=0 // loop_header
    %s15 = sphi 0, %s19
    %p16 = scmp.ge.s32.totalorder %s15, 4
    %s22 = sphi 0, %s34
    %s23 = sphi 0, %s30
    %s24 = sphi 0, %s22
    %s25 = sphi 0, %s23
    %s26 = sphi 0, %s24
    %s27 = sphi 0, %s25
    %s39 = sphi 0, %s41
    %s42 = sphi 0, %s39
    %s43 = sphi 0, %s42
    %s59 = sphi 0, %s43
    %s65 = sphi 0, %s67
    %s68 = sphi 0, %s65
    %s69 = sphi 0, %s68
    %s85 = sphi 0, %s69
    %s91 = sphi 0, %s93
    %s94 = sphi 0, %s91
    %s95 = sphi 0, %s94
    %s111 = sphi 0, %s95
    %s117 = sphi 0, %s119
    %s120 = sphi 0, %s117
    %s121 = sphi 0, %s120
    %s137 = sphi 0, %s121
    %s141 = sphi 0, %s141
    %s143 = sphi 0, %s141
    %s144 = sphi 0, %s143
    %s158 = sphi 0, %s144
    %s162 = sphi 0, %s162
    %s164 = sphi 0, %s162
    %s165 = sphi 0, %s164
    %s179 = sphi 0, %s165
    %s183 = sphi 0, %s183
    %s185 = sphi 0, %s183
    %s186 = sphi 0, %s185
    %s200 = sphi 0, %s186
    %s204 = sphi 0, %s204
    %s206 = sphi 0, %s204
    %s207 = sphi 0, %s206
    %s221 = sphi 0, %s207
    %s225 = sphi 0, %s225
    %s227 = sphi 0, %s225
    %s228 = sphi 0, %s227
    %s242 = sphi 0, %s228
    %s250 = sphi 0, %s252
    %s253 = sphi 0, %s250
    %s254 = sphi 0, %s253
    %s270 = sphi 0, %s254
  $region4: #{controlnet_wrapper_forward.1} parent=0 // loop_header_branch
    %18 = sbr.rel (%p16) target = $region8
  $region5: #{controlnet_wrapper_forward.1} parent=0 // loop_body
    %s20 = ssub.s32 %s15, 1
    %s21 = ssub.s32 %s15, 2
    %s28 = sadd.s32 1, %s23
    %p29 = scmp.ge.s32.totalorder %s28, 1
    %s30 = scalar_select %p29, 0, %s28
    %s31 = sadd.s32 1, %s22
    %s32 = scalar_select %p29, %s31, %s22
    %p33 = scmp.ge.s32.totalorder %s32, 2
    %s34 = scalar_select %p33, 0, %s32
    %s35 = ssub.s32 %s22, %s34
    %s36 = ssub.s32 %s23, %s30
    %s37 = sor.u32 %s35, %s36
    %p38 = scmp.eq.s32.totalorder %s37, 0
    %s40 = sadd.s32 %s39, 1
    %s41 = scalar_select %p38, %s39, %s40
    %p44 = pneg %p38
    %p45 = scmp.eq.s32.totalorder %s15, 1
    %p46 = por %p44, %p45
    %p47 = scmp.ne.s32.totalorder %s39, %s42
    %p48 = scmp.eq.s32.totalorder %s15, 0
    %p49 = por %p47, %p48
    %p50 = scmp.ne.s32.totalorder %s39, %s42
    %p51 = scmp.eq.s32.totalorder %s20, 1
    %p52 = por %p50, %p51
    %p53 = scmp.ne.s32.totalorder %s42, %s43
    %p54 = scmp.eq.s32.totalorder %s20, 0
    %p55 = por %p53, %p54
    %p56 = scmp.ne.s32.totalorder %s42, %s43
    %p57 = scmp.eq.s32.totalorder %s21, 1
    %p58 = por %p56, %p57
    %p60 = scmp.ne.s32.totalorder %s43, %s59
    %p61 = scmp.eq.s32.totalorder %s21, 0
    %p62 = por %p60, %p61
    %s63 = ssub.s32 %s22, %s34
    %p64 = scmp.eq.s32.totalorder %s63, 0
    %s66 = sadd.s32 %s65, 1
    %s67 = scalar_select %p64, %s65, %s66
    %p70 = pneg %p64
    %p71 = scmp.eq.s32.totalorder %s15, 1
    %p72 = por %p70, %p71
    %p73 = scmp.ne.s32.totalorder %s65, %s68
    %p74 = scmp.eq.s32.totalorder %s15, 0
    %p75 = por %p73, %p74
    %p76 = scmp.ne.s32.totalorder %s65, %s68
    %p77 = scmp.eq.s32.totalorder %s20, 1
    %p78 = por %p76, %p77
    %p79 = scmp.ne.s32.totalorder %s68, %s69
    %p80 = scmp.eq.s32.totalorder %s20, 0
    %p81 = por %p79, %p80
    %p82 = scmp.ne.s32.totalorder %s68, %s69
    %p83 = scmp.eq.s32.totalorder %s21, 1
    %p84 = por %p82, %p83
    %p86 = scmp.ne.s32.totalorder %s69, %s85
    %p87 = scmp.eq.s32.totalorder %s21, 0
    %p88 = por %p86, %p87
    %s89 = ssub.s32 %s22, %s34
    %p90 = scmp.eq.s32.totalorder %s89, 0
    %s92 = sadd.s32 %s91, 1
    %s93 = scalar_select %p90, %s91, %s92
    %p96 = pneg %p90
    %p97 = scmp.eq.s32.totalorder %s15, 1
    %p98 = por %p96, %p97
    %p99 = scmp.ne.s32.totalorder %s91, %s94
    %p100 = scmp.eq.s32.totalorder %s15, 0
    %p101 = por %p99, %p100
    %p102 = scmp.ne.s32.totalorder %s91, %s94
    %p103 = scmp.eq.s32.totalorder %s20, 1
    %p104 = por %p102, %p103
    %p105 = scmp.ne.s32.totalorder %s94, %s95
    %p106 = scmp.eq.s32.totalorder %s20, 0
    %p107 = por %p105, %p106
    %p108 = scmp.ne.s32.totalorder %s94, %s95
    %p109 = scmp.eq.s32.totalorder %s21, 1
    %p110 = por %p108, %p109
    %p112 = scmp.ne.s32.totalorder %s95, %s111
    %p113 = scmp.eq.s32.totalorder %s21, 0
    %p114 = por %p112, %p113
    %s115 = ssub.s32 %s22, %s34
    %p116 = scmp.eq.s32.totalorder %s115, 0
    %s118 = sadd.s32 %s117, 1
    %s119 = scalar_select %p116, %s117, %s118
    %p122 = pneg %p116
    %p123 = scmp.eq.s32.totalorder %s15, 1
    %p124 = por %p122, %p123
    %p125 = scmp.ne.s32.totalorder %s117, %s120
    %p126 = scmp.eq.s32.totalorder %s15, 0
    %p127 = por %p125, %p126
    %p128 = scmp.ne.s32.totalorder %s117, %s120
    %p129 = scmp.eq.s32.totalorder %s20, 1
    %p130 = por %p128, %p129
    %p131 = scmp.ne.s32.totalorder %s120, %s121
    %p132 = scmp.eq.s32.totalorder %s20, 0
    %p133 = por %p131, %p132
    %p134 = scmp.ne.s32.totalorder %s120, %s121
    %p135 = scmp.eq.s32.totalorder %s21, 1
    %p136 = por %p134, %p135
    %p138 = scmp.ne.s32.totalorder %s121, %s137
    %p139 = scmp.eq.s32.totalorder %s21, 0
    %p140 = por %p138, %p139
    %s142 = sadd.s32 %s141, 1
    %p145 = scmp.eq.s32.totalorder %s15, 1
    %p146 = scmp.ne.s32.totalorder %s141, %s143
    %p147 = scmp.eq.s32.totalorder %s15, 0
    %p148 = por %p146, %p147
    %p149 = scmp.ne.s32.totalorder %s141, %s143
    %p150 = scmp.eq.s32.totalorder %s20, 1
    %p151 = por %p149, %p150
    %p152 = scmp.ne.s32.totalorder %s143, %s144
    %p153 = scmp.eq.s32.totalorder %s20, 0
    %p154 = por %p152, %p153
    %p155 = scmp.ne.s32.totalorder %s143, %s144
    %p156 = scmp.eq.s32.totalorder %s21, 1
    %p157 = por %p155, %p156
    %p159 = scmp.ne.s32.totalorder %s144, %s158
    %p160 = scmp.eq.s32.totalorder %s21, 0
    %p161 = por %p159, %p160
    %s163 = sadd.s32 %s162, 1
    %p166 = scmp.eq.s32.totalorder %s15, 1
    %p167 = scmp.ne.s32.totalorder %s162, %s164
    %p168 = scmp.eq.s32.totalorder %s15, 0
    %p169 = por %p167, %p168
    %p170 = scmp.ne.s32.totalorder %s162, %s164
    %p171 = scmp.eq.s32.totalorder %s20, 1
    %p172 = por %p170, %p171
    %p173 = scmp.ne.s32.totalorder %s164, %s165
    %p174 = scmp.eq.s32.totalorder %s20, 0
    %p175 = por %p173, %p174
    %p176 = scmp.ne.s32.totalorder %s164, %s165
    %p177 = scmp.eq.s32.totalorder %s21, 1
    %p178 = por %p176, %p177
    %p180 = scmp.ne.s32.totalorder %s165, %s179
    %p181 = scmp.eq.s32.totalorder %s21, 0
    %p182 = por %p180, %p181
    %s184 = sadd.s32 %s183, 1
    %p187 = scmp.eq.s32.totalorder %s15, 1
    %p188 = scmp.ne.s32.totalorder %s183, %s185
    %p189 = scmp.eq.s32.totalorder %s15, 0
    %p190 = por %p188, %p189
    %p191 = scmp.ne.s32.totalorder %s183, %s185
    %p192 = scmp.eq.s32.totalorder %s20, 1
    %p193 = por %p191, %p192
    %p194 = scmp.ne.s32.totalorder %s185, %s186
    %p195 = scmp.eq.s32.totalorder %s20, 0
    %p196 = por %p194, %p195
    %p197 = scmp.ne.s32.totalorder %s185, %s186
    %p198 = scmp.eq.s32.totalorder %s21, 1
    %p199 = por %p197, %p198
    %p201 = scmp.ne.s32.totalorder %s186, %s200
    %p202 = scmp.eq.s32.totalorder %s21, 0
    %p203 = por %p201, %p202
    %s205 = sadd.s32 %s204, 1
    %p208 = scmp.eq.s32.totalorder %s15, 1
    %p209 = scmp.ne.s32.totalorder %s204, %s206
    %p210 = scmp.eq.s32.totalorder %s15, 0
    %p211 = por %p209, %p210
    %p212 = scmp.ne.s32.totalorder %s204, %s206
    %p213 = scmp.eq.s32.totalorder %s20, 1
    %p214 = por %p212, %p213
    %p215 = scmp.ne.s32.totalorder %s206, %s207
    %p216 = scmp.eq.s32.totalorder %s20, 0
    %p217 = por %p215, %p216
    %p218 = scmp.ne.s32.totalorder %s206, %s207
    %p219 = scmp.eq.s32.totalorder %s21, 1
    %p220 = por %p218, %p219
    %p222 = scmp.ne.s32.totalorder %s207, %s221
    %p223 = scmp.eq.s32.totalorder %s21, 0
    %p224 = por %p222, %p223
    %s226 = sadd.s32 %s225, 1
    %p229 = scmp.eq.s32.totalorder %s15, 1
    %p230 = scmp.ne.s32.totalorder %s225, %s227
    %p231 = scmp.eq.s32.totalorder %s15, 0
    %p232 = por %p230, %p231
    %p233 = scmp.ne.s32.totalorder %s225, %s227
    %p234 = scmp.eq.s32.totalorder %s20, 1
    %p235 = por %p233, %p234
    %p236 = scmp.ne.s32.totalorder %s227, %s228
    %p237 = scmp.eq.s32.totalorder %s20, 0
    %p238 = por %p236, %p237
    %p239 = scmp.ne.s32.totalorder %s227, %s228
    %p240 = scmp.eq.s32.totalorder %s21, 1
    %p241 = por %p239, %p240
    %p243 = scmp.ne.s32.totalorder %s228, %s242
    %p244 = scmp.eq.s32.totalorder %s21, 0
    %p245 = por %p243, %p244
    %s246 = ssub.s32 %s22, %s34
    %s247 = ssub.s32 %s23, %s30
    %s248 = sor.u32 %s246, %s247
    %p249 = scmp.eq.s32.totalorder %s248, 0
    %s251 = sadd.s32 %s250, 1
    %s252 = scalar_select %p249, %s250, %s251
    %p255 = pneg %p249
    %p256 = scmp.eq.s32.totalorder %s15, 1
    %p257 = por %p255, %p256
    %p258 = scmp.ne.s32.totalorder %s250, %s253
    %p259 = scmp.eq.s32.totalorder %s15, 0
    %p260 = por %p258, %p259
    %p261 = scmp.ne.s32.totalorder %s250, %s253
    %p262 = scmp.eq.s32.totalorder %s20, 1
    %p263 = por %p261, %p262
    %p264 = scmp.ne.s32.totalorder %s253, %s254
    %p265 = scmp.eq.s32.totalorder %s20, 0
    %p266 = por %p264, %p265
    %p267 = scmp.ne.s32.totalorder %s253, %s254
    %p268 = scmp.eq.s32.totalorder %s21, 1
    %p269 = por %p267, %p268
    %p271 = scmp.ne.s32.totalorder %s254, %s270
    %p272 = scmp.eq.s32.totalorder %s21, 0
    %p273 = por %p271, %p272
    %p274 = scmp.le.s32.totalorder 1, %s15
    %p275 = scmp.lt.s32.totalorder %s15, 3
    %p276 = pnand %p274, %p275
    %p277 = pneg %p276
    // Predicated region
    $region9: #{controlnet_wrapper_forward.1} parent=5 // pred_check
      _
    $region10: #{controlnet_wrapper_forward.1} parent=5 // pred_check_branch
      %279 = sbr.rel (%p276) target = $region12
    $region11: #{controlnet_wrapper_forward.1} parent=5 // pred_region
      %s280 = ssub.s32 %s15, 1
      // Predicated region
      $region13: #{controlnet_wrapper_forward.1} parent=11 // pred_check
        %p281 = pneg %p154
      $region14: #{controlnet_wrapper_forward.1} parent=11 // pred_check_branch
        %283 = sbr.rel (%p281) target = $region16
      $region15: #{controlnet_wrapper_forward.1} parent=11 // pred_region
        _
      $region16: #{controlnet_wrapper_forward.1} parent=11 // pred_fallthru
        _
      // Predicated region
      $region17: #{controlnet_wrapper_forward.1} parent=11 // pred_check
        %p284 = pneg %p175
      $region18: #{controlnet_wrapper_forward.1} parent=11 // pred_check_branch
        %286 = sbr.rel (%p284) target = $region20
      $region19: #{controlnet_wrapper_forward.1} parent=11 // pred_region
        _
      $region20: #{controlnet_wrapper_forward.1} parent=11 // pred_fallthru
        _
      // Predicated region
      $region21: #{controlnet_wrapper_forward.1} parent=11 // pred_check
        %p287 = pneg %p196
      $region22: #{controlnet_wrapper_forward.1} parent=11 // pred_check_branch
        %289 = sbr.rel (%p287) target = $region24
      $region23: #{controlnet_wrapper_forward.1} parent=11 // pred_region
        _
      $region24: #{controlnet_wrapper_forward.1} parent=11 // pred_fallthru
        _
      // Predicated region
      $region25: #{controlnet_wrapper_forward.1} parent=11 // pred_check
        %p290 = pneg %p217
      $region26: #{controlnet_wrapper_forward.1} parent=11 // pred_check_branch
        %292 = sbr.rel (%p290) target = $region28
      $region27: #{controlnet_wrapper_forward.1} parent=11 // pred_region
        _
      $region28: #{controlnet_wrapper_forward.1} parent=11 // pred_fallthru
        _
      // Predicated region
      $region29: #{controlnet_wrapper_forward.1} parent=11 // pred_check
        %p293 = pneg %p238
      $region30: #{controlnet_wrapper_forward.1} parent=11 // pred_check_branch
        %295 = sbr.rel (%p293) target = $region32
      $region31: #{controlnet_wrapper_forward.1} parent=11 // pred_region
        _
      $region32: #{controlnet_wrapper_forward.1} parent=11 // pred_fallthru
        _
    $region12: #{controlnet_wrapper_forward.1} parent=5 // pred_fallthru
      _
    %p296 = scmp.lt.s32.totalorder %s15, 2
    // Predicated region
    $region33: #{controlnet_wrapper_forward.1} parent=5 // pred_check
      %p297 = pneg %p296
    $region34: #{controlnet_wrapper_forward.1} parent=5 // pred_check_branch
      %299 = sbr.rel (%p297) target = $region36
    $region35: #{controlnet_wrapper_forward.1} parent=5 // pred_region
      // Predicated region
      $region37: #{controlnet_wrapper_forward.1} parent=35 // pred_check
        %p300 = pneg %p49
      $region38: #{controlnet_wrapper_forward.1} parent=35 // pred_check_branch
        %302 = sbr.rel (%p300) target = $region40
      $region39: #{controlnet_wrapper_forward.1} parent=35 // pred_region
        %s303 = smul.u32 2, %s23
        %p304 = scmp.lt.s32.totalorder %s22, 1
        %s305 = scalar_select %p304, %s22, 1
        %p306 = scmp.lt.s32.totalorder %s303, 1
        %s307 = scalar_select %p306, %s303, 1
        %s308 = smul.addr %s305, 18
        %s309 = sadd.s32 %s307, %s308
        %s310 = smul.addr %s309, 4
        %s311 = scalar_lea.vmem %s0, %s310
        %s312 = smul.u32 2, %s23
      $region40: #{controlnet_wrapper_forward.1} parent=35 // pred_fallthru
        _
      // Predicated region
      $region41: #{controlnet_wrapper_forward.1} parent=35 // pred_check
        %p313 = pneg %p75
      $region42: #{controlnet_wrapper_forward.1} parent=35 // pred_check_branch
        %315 = sbr.rel (%p313) target = $region44
      $region43: #{controlnet_wrapper_forward.1} parent=35 // pred_region
        %p316 = scmp.lt.s32.totalorder %s22, 1
        %s317 = scalar_select %p316, %s22, 1
        %s318 = smul.addr %s317, 8
        %s319 = smul.addr %s318, 8
        %s320 = scalar_lea.vmem %s1, %s319
      $region44: #{controlnet_wrapper_forward.1} parent=35 // pred_fallthru
        _
      // Predicated region
      $region45: #{controlnet_wrapper_forward.1} parent=35 // pred_check
        %p321 = pneg %p101
      $region46: #{controlnet_wrapper_forward.1} parent=35 // pred_check_branch
        %323 = sbr.rel (%p321) target = $region48
      $region47: #{controlnet_wrapper_forward.1} parent=35 // pred_region
        %p324 = scmp.lt.s32.totalorder %s22, 1
        %s325 = scalar_select %p324, %s22, 1
        %s326 = smul.addr %s325, 4
        %s327 = scalar_lea.vmem %s2, %s326
      $region48: #{controlnet_wrapper_forward.1} parent=35 // pred_fallthru
        _
      // Predicated region
      $region49: #{controlnet_wrapper_forward.1} parent=35 // pred_check
        %p328 = pneg %p127
      $region50: #{controlnet_wrapper_forward.1} parent=35 // pred_check_branch
        %330 = sbr.rel (%p328) target = $region52
      $region51: #{controlnet_wrapper_forward.1} parent=35 // pred_region
        %p331 = scmp.lt.s32.totalorder %s22, 1
        %s332 = scalar_select %p331, %s22, 1
        %s333 = smul.addr %s332, 4
        %s334 = smul.addr %s333, 4
        %s335 = scalar_lea.vmem %s3, %s334
      $region52: #{controlnet_wrapper_forward.1} parent=35 // pred_fallthru
        _
    $region36: #{controlnet_wrapper_forward.1} parent=5 // pred_fallthru
      _
    %p336 = scmp.le.s32.totalorder 1, %s15
    %p337 = scmp.lt.s32.totalorder %s15, 3
    %p338 = pnand %p336, %p337
    %p339 = pneg %p338
    // Predicated region
    $region53: #{controlnet_wrapper_forward.1} parent=5 // pred_check
      _
    $region54: #{controlnet_wrapper_forward.1} parent=5 // pred_check_branch
      %341 = sbr.rel (%p338) target = $region56
    $region55: #{controlnet_wrapper_forward.1} parent=5 // pred_region
      %s342 = ssub.s32 %s15, 1
      %s343 = smul.u32 2, %s25
      %p344 = scmp.lt.s32.totalorder %s24, 1
      %s345 = scalar_select %p344, %s24, 1
      %p346 = scmp.lt.s32.totalorder %s343, 1
      %s347 = scalar_select %p346, %s343, 1
      %s348 = smul.addr %s345, 18
      %s349 = sadd.s32 %s347, %s348
      %s350 = smul.addr %s349, 4
      %s351 = scalar_lea.vmem %s0, %s350
      %p352 = pneg %p55
      %p353 = pneg %p52
      %p354 = scmp.lt.s32.totalorder %s24, 1
      %s355 = scalar_select %p354, %s24, 1
      %s356 = smul.addr %s355, 8
      %s357 = smul.addr %s356, 8
      %s358 = scalar_lea.vmem %s1, %s357
      %p359 = pneg %p81
      %p360 = pneg %p78
      %p361 = scmp.lt.s32.totalorder %s24, 1
      %s362 = scalar_select %p361, %s24, 1
      %s363 = smul.addr %s362, 4
      %s364 = scalar_lea.vmem %s2, %s363
      %p365 = pneg %p107
      %p366 = pneg %p104
      %p367 = scmp.lt.s32.totalorder %s24, 1
      %s368 = scalar_select %p367, %s24, 1
      %s369 = smul.addr %s368, 4
      %s370 = smul.addr %s369, 4
      %s371 = scalar_lea.vmem %s3, %s370
      %p372 = pneg %p133
      %p373 = pneg %p130
      %p374 = pneg %p154
      %p375 = pneg %p151
      %p376 = pneg %p175
      %p377 = pneg %p172
      %p378 = pneg %p196
      %p379 = pneg %p193
      %p380 = pneg %p217
      %p381 = pneg %p214
      %p382 = pneg %p238
      %p383 = pneg %p235
      %p384 = pneg %p266
      %p385 = pneg %p263
      %s386 = smul.u32 2, %s25
      %p387 = scmp.lt.s32.totalorder %s24, 1
      %s388 = scalar_select %p387, %s24, 1
      %p389 = scmp.lt.s32.totalorder %s386, 1
      %s390 = scalar_select %p389, %s386, 1
      %s391 = smul.addr %s388, 2
      %s392 = sadd.s32 %s390, %s391
      %s393 = smul.addr %s392, 4
      %s394 = scalar_lea.vmem %s9, %s393
      %s395 = smul.u32 2, %s25
      %p396 = scmp.lt.s32.totalorder %s24, 1
      %s397 = scalar_select %p396, %s24, 1
      %p398 = scmp.lt.s32.totalorder %s395, 1
      %s399 = scalar_select %p398, %s395, 1
      %s400 = smul.addr %s397, 18
      %s401 = sadd.s32 %s399, %s400
      %s402 = smul.addr %s401, 4
      %s403 = scalar_lea.vmem %s0, %s402
      %s404 = smul.u32 2, %s25
      %p405 = scmp.lt.s32.totalorder %s24, 1
      %s406 = scalar_select %p405, %s24, 1
      %s407 = smul.addr %s406, 8
      %s408 = smul.addr %s407, 8
      %s409 = scalar_lea.vmem %s1, %s408
      %p410 = scmp.lt.s32.totalorder %s24, 1
      %s411 = scalar_select %p410, %s24, 1
      %s412 = smul.addr %s411, 4
      %s413 = scalar_lea.vmem %s2, %s412
      %p414 = scmp.lt.s32.totalorder %s24, 1
      %s415 = scalar_select %p414, %s24, 1
      %s416 = smul.addr %s415, 4
      %s417 = smul.addr %s416, 4
      %s418 = scalar_lea.vmem %s3, %s417
      %s419 = smul.u32 2, %s25
      %p420 = scmp.lt.s32.totalorder %s24, 1
      %s421 = scalar_select %p420, %s24, 1
      %p422 = scmp.lt.s32.totalorder %s419, 1
      %s423 = scalar_select %p422, %s419, 1
      %s424 = smul.addr %s421, 2
      %s425 = sadd.s32 %s423, %s424
      %s426 = smul.addr %s425, 4
      %s427 = scalar_lea.vmem %s9, %s426
      %s428 = smul.u32 2, %s25
      %v430 = vld [vmem:[%s4] sm:$0xf]
      %v431 = vld [vmem:[%s4 + $0x4] sm:$0xf]
      %v432 = vld [vmem:[%s4 + $0x8] sm:$0xf]
      %v433 = vld [vmem:[%s4 + $0xc] sm:$0xf]
      %v434 = vld [vmem:[%s4 + $0x10] sm:$0xf]
      %v435 = vld [vmem:[%s4 + $0x14] sm:$0xf]
      %v436 = vld [vmem:[%s4 + $0x18] sm:$0xf]
      %v437 = vld [vmem:[%s4 + $0x1c] sm:$0xf]
      %v438 = vld [vmem:[%s403] sm:$0xff]
      %v439 = vld [vmem:[%s403 + $0x8] sm:$0xff]
      %v440 = vld [vmem:[%s403 + $0x10] sm:$0xff]
      %v441 = vld [vmem:[%s403 + $0x18] sm:$0xff]
      %v442 = vld [vmem:[%s403 + $0x20] sm:$0xff]
      %v443 = vld [vmem:[%s403 + $0x28] sm:$0xff]
      %v444 = vld [vmem:[%s403 + $0x30] sm:$0xff]
      %v445 = vld [vmem:[%s403 + $0x38] sm:$0xff]
      %v446 = vld [vmem:[%s403 + $0x40] sm:$0xff]
      %v455 = vunpack.c.l.b16 %v430
      %v456 = vunpack.c.l.b16 %v431
      %v457 = vunpack.c.l.b16 %v432
      %v458 = vunpack.c.l.b16 %v433
      %v459 = vunpack.c.l.b16 %v434
      %v460 = vunpack.c.l.b16 %v435
      %v461 = vunpack.c.l.b16 %v436
      %v462 = vunpack.c.l.b16 %v437
      %v463 = vpack.c.b16 %v456, %v455
      %v464 = vpack.c.b16 %v458, %v457
      %v465 = vpack.c.b16 %v460, %v459
      %v466 = vpack.c.b16 %v462, %v461
      %v476 = vunpack.c.l.b16 %v438
      %v477 = vunpack.c.h.b16 %v438
      %v478 = vunpack.c.l.b16 %v439
      %v479 = vunpack.c.h.b16 %v439
      %v480 = vunpack.c.l.b16 %v440
      %v481 = vunpack.c.h.b16 %v440
      %v482 = vunpack.c.l.b16 %v441
      %v483 = vunpack.c.h.b16 %v441
      %v484 = vunpack.c.l.b16 %v442
      %v485 = vunpack.c.h.b16 %v442
      %v486 = vunpack.c.l.b16 %v443
      %v487 = vunpack.c.h.b16 %v443
      %v488 = vunpack.c.l.b16 %v444
      %v489 = vunpack.c.h.b16 %v444
      %v490 = vunpack.c.l.b16 %v445
      %v491 = vunpack.c.h.b16 %v445
      %v492 = vunpack.c.l.b16 %v446
      %v493 = vunpack.c.h.b16 %v446
      %v494 = vpack.c.b16 %v478, %v476
      %v495 = vpack.c.b16 %v479, %v477
      %v496 = vpack.c.b16 %v482, %v480
      %v497 = vpack.c.b16 %v483, %v481
      %v498 = vpack.c.b16 %v486, %v484
      %v499 = vpack.c.b16 %v487, %v485
      %v500 = vpack.c.b16 %v490, %v488
      %v501 = vpack.c.b16 %v491, %v489
      %v502 = vpack.c.b16 %v492, %v492
      %v503 = vpack.c.b16 %v493, %v493
      %vm512 = vcmask 588800
      %v514 = vsel %vm512, %v463, 0
      %v517 = vsel %vm512, %v464, 0
      %v520 = vsel %vm512, %v465, 0
      %v523 = vsel %vm512, %v466, 0
      %vm525 = vcmask 1043456
      %v527 = vsel %vm525, %v502, 0
      %v530 = vsel %vm525, %v503, 0
      %532 = vmatpush.bf16.msra.mxu0 0
      %533 = vmatpush.bf16.msra.mxu0 0
      %534 = vmatpush.bf16.msra.mxu0 0
      %535 = vmatpush.bf16.msra.mxu0 %v527
      %536 = vmatpush.bf16.msra.mxu0 %v500
      %537 = vmatpush.bf16.msra.mxu0 %v498
      %538 = vmatpush.bf16.msra.mxu0 %v496
      %539 = vmatpush.bf16.msra.mxu0 %v494
      %540 = vmatmul.bf16.gmra.mxu0 %v514
      %v541 = vpop.f32.mrf.mxu0
      %v542 = vadd.f32 0.0, %v541
      %v543 = vpop.f32.mrf.mxu0
      %v544 = vadd.f32 0.0, %v543
      %545 = vmatmul.bf16.gmra.mxu0 %v517
      %v546 = vpop.f32.mrf.mxu0
      %v547 = vadd.f32 0.0, %v546
      %v548 = vpop.f32.mrf.mxu0
      %v549 = vadd.f32 0.0, %v548
      %550 = vmatmul.bf16.gmra.mxu0 %v520
      %v551 = vpop.f32.mrf.mxu0
      %v552 = vadd.f32 0.0, %v551
      %v553 = vpop.f32.mrf.mxu0
      %v554 = vadd.f32 0.0, %v553
      %555 = vmatmul.bf16.gmra.mxu0 %v523
      %v556 = vpop.f32.mrf.mxu0
      %v557 = vadd.f32 0.0, %v556
      %v558 = vpop.f32.mrf.mxu0
      %v559 = vadd.f32 0.0, %v558
      %560 = vdwg.mxu0
      %561 = vmatpush.bf16.msra.mxu0 0
      %562 = vmatpush.bf16.msra.mxu0 0
      %563 = vmatpush.bf16.msra.mxu0 0
      %564 = vmatpush.bf16.msra.mxu0 %v530
      %565 = vmatpush.bf16.msra.mxu0 %v501
      %566 = vmatpush.bf16.msra.mxu0 %v499
      %567 = vmatpush.bf16.msra.mxu0 %v497
      %568 = vmatpush.bf16.msra.mxu0 %v495
      %569 = vmatmul.bf16.gmra.mxu0 %v514
      %v570 = vpop.f32.mrf.mxu0
      %v571 = vadd.f32 0.0, %v570
      %v572 = vpop.f32.mrf.mxu0
      %v573 = vadd.f32 0.0, %v572
      %574 = vmatmul.bf16.gmra.mxu0 %v517
      %v575 = vpop.f32.mrf.mxu0
      %v576 = vadd.f32 0.0, %v575
      %v577 = vpop.f32.mrf.mxu0
      %v578 = vadd.f32 0.0, %v577
      %579 = vmatmul.bf16.gmra.mxu0 %v520
      %v580 = vpop.f32.mrf.mxu0
      %v581 = vadd.f32 0.0, %v580
      %v582 = vpop.f32.mrf.mxu0
      %v583 = vadd.f32 0.0, %v582
      %584 = vmatmul.bf16.gmra.mxu0 %v523
      %v585 = vpop.f32.mrf.mxu0
      %v586 = vadd.f32 0.0, %v585
      %v587 = vpop.f32.mrf.mxu0
      %v588 = vadd.f32 0.0, %v587
      %589 = vdwg.mxu0
      %v590 = vld [vmem:[%s409] sm:$0xff]
      %v591 = vld [vmem:[%s409 + $0x8] sm:$0xff]
      %v592 = vld [vmem:[%s409 + $0x10] sm:$0xff]
      %v593 = vld [vmem:[%s409 + $0x18] sm:$0xff]
      %v594 = vld [vmem:[%s409 + $0x20] sm:$0xff]
      %v595 = vld [vmem:[%s409 + $0x28] sm:$0xff]
      %v596 = vld [vmem:[%s409 + $0x30] sm:$0xff]
      %v597 = vld [vmem:[%s409 + $0x38] sm:$0xff]
      %599 = vset.pattern.permute.xlu0 0
      %600 = vperm.xlu0 %599, %v590
      %v601 = vpop.permute.xlu0 %600
      %604 = vset.pattern.permute.xlu0 0
      %605 = vperm.xlu0 %604, %v591
      %v606 = vpop.permute.xlu0 %605
      %609 = vset.pattern.permute.xlu0 0
      %610 = vperm.xlu0 %609, %v592
      %v611 = vpop.permute.xlu0 %610
      %614 = vset.pattern.permute.xlu0 0
      %615 = vperm.xlu0 %614, %v593
      %v616 = vpop.permute.xlu0 %615
      %v618 = vadd.f32 %v542, %v601
      %v619 = vadd.f32 %v571, %v601
      %v620 = vadd.f32 %v544, %v606
      %v621 = vadd.f32 %v573, %v606
      %v622 = vadd.f32 %v547, %v611
      %v623 = vadd.f32 %v576, %v611
      %v624 = vadd.f32 %v549, %v616
      %v625 = vadd.f32 %v578, %v616
      %v626 = vxor.u32 %v618, 2147483648
      %v627 = vxor.u32 %v619, 2147483648
      %v628 = vxor.u32 %v620, 2147483648
      %v629 = vxor.u32 %v621, 2147483648
      %v630 = vxor.u32 %v622, 2147483648
      %v631 = vxor.u32 %v623, 2147483648
      %v632 = vxor.u32 %v624, 2147483648
      %v633 = vxor.u32 %v625, 2147483648
      %v634 = vmul.f32 %v626, 1.442695
      %v635 = vpow.pop %v634
      %v636 = vmul.f32 %v627, 1.442695
      %v637 = vpow.pop %v636
      %v638 = vmul.f32 %v628, 1.442695
      %v639 = vpow.pop %v638
      %v640 = vmul.f32 %v629, 1.442695
      %v641 = vpow.pop %v640
      %v642 = vmul.f32 %v630, 1.442695
      %v643 = vpow.pop %v642
      %v644 = vmul.f32 %v631, 1.442695
      %v645 = vpow.pop %v644
      %v646 = vmul.f32 %v632, 1.442695
      %v647 = vpow.pop %v646
      %v648 = vmul.f32 %v633, 1.442695
      %v649 = vpow.pop %v648
      %v650 = vadd.f32 %v635, 1.0
      %v651 = vadd.f32 %v637, 1.0
      %v652 = vadd.f32 %v639, 1.0
      %v653 = vadd.f32 %v641, 1.0
      %v654 = vadd.f32 %v643, 1.0
      %v655 = vadd.f32 %v645, 1.0
      %v656 = vadd.f32 %v647, 1.0
      %v657 = vadd.f32 %v649, 1.0
      %v658 = vrcp.pop %v650
      %v659 = vmul.f32 %v650, %v658
      %v660 = vsub.f32 1.0, %v659
      %v661 = vmul.f32 %v658, %v660
      %v662 = vadd.f32 %v658, %v661
      %vm663 = vweird.f32 %v650
      %vm664 = vweird.f32 %v658
      %vm665 = vmor %vm663, %vm664
      %v666 = vsel %vm665, %v658, %v662
      %v667 = vand.u32 2147483647, %v650
      %vm668 = vcmp.eq.f32.partialorder %v667, 8.507059e+37
      %v669 = vand.u32 %v650, 2147483648
      %v670 = vor.u32 1.1754944e-38, %v669
      %v671 = vsel %vm668, %v670, %v666
      %v672 = vmul.f32 1.0, %v671
      %v673 = vrcp.pop %v651
      %v674 = vmul.f32 %v651, %v673
      %v675 = vsub.f32 1.0, %v674
      %v676 = vmul.f32 %v673, %v675
      %v677 = vadd.f32 %v673, %v676
      %vm678 = vweird.f32 %v651
      %vm679 = vweird.f32 %v673
      %vm680 = vmor %vm678, %vm679
      %v681 = vsel %vm680, %v673, %v677
      %v682 = vand.u32 2147483647, %v651
      %vm683 = vcmp.eq.f32.partialorder %v682, 8.507059e+37
      %v684 = vand.u32 %v651, 2147483648
      %v685 = vor.u32 1.1754944e-38, %v684
      %v686 = vsel %vm683, %v685, %v681
      %v687 = vmul.f32 1.0, %v686
      %v688 = vrcp.pop %v652
      %v689 = vmul.f32 %v652, %v688
      %v690 = vsub.f32 1.0, %v689
      %v691 = vmul.f32 %v688, %v690
      %v692 = vadd.f32 %v688, %v691
      %vm693 = vweird.f32 %v652
      %vm694 = vweird.f32 %v688
      %vm695 = vmor %vm693, %vm694
      %v696 = vsel %vm695, %v688, %v692
      %v697 = vand.u32 2147483647, %v652
      %vm698 = vcmp.eq.f32.partialorder %v697, 8.507059e+37
      %v699 = vand.u32 %v652, 2147483648
      %v700 = vor.u32 1.1754944e-38, %v699
      %v701 = vsel %vm698, %v700, %v696
      %v702 = vmul.f32 1.0, %v701
      %v703 = vrcp.pop %v653
      %v704 = vmul.f32 %v653, %v703
      %v705 = vsub.f32 1.0, %v704
      %v706 = vmul.f32 %v703, %v705
      %v707 = vadd.f32 %v703, %v706
      %vm708 = vweird.f32 %v653
      %vm709 = vweird.f32 %v703
      %vm710 = vmor %vm708, %vm709
      %v711 = vsel %vm710, %v703, %v707
      %v712 = vand.u32 2147483647, %v653
      %vm713 = vcmp.eq.f32.partialorder %v712, 8.507059e+37
      %v714 = vand.u32 %v653, 2147483648
      %v715 = vor.u32 1.1754944e-38, %v714
      %v716 = vsel %vm713, %v715, %v711
      %v717 = vmul.f32 1.0, %v716
      %v718 = vrcp.pop %v654
      %v719 = vmul.f32 %v654, %v718
      %v720 = vsub.f32 1.0, %v719
      %v721 = vmul.f32 %v718, %v720
      %v722 = vadd.f32 %v718, %v721
      %vm723 = vweird.f32 %v654
      %vm724 = vweird.f32 %v718
      %vm725 = vmor %vm723, %vm724
      %v726 = vsel %vm725, %v718, %v722
      %v727 = vand.u32 2147483647, %v654
      %vm728 = vcmp.eq.f32.partialorder %v727, 8.507059e+37
      %v729 = vand.u32 %v654, 2147483648
      %v730 = vor.u32 1.1754944e-38, %v729
      %v731 = vsel %vm728, %v730, %v726
      %v732 = vmul.f32 1.0, %v731
      %v733 = vrcp.pop %v655
      %v734 = vmul.f32 %v655, %v733
      %v735 = vsub.f32 1.0, %v734
      %v736 = vmul.f32 %v733, %v735
      %v737 = vadd.f32 %v733, %v736
      %vm738 = vweird.f32 %v655
      %vm739 = vweird.f32 %v733
      %vm740 = vmor %vm738, %vm739
      %v741 = vsel %vm740, %v733, %v737
      %v742 = vand.u32 2147483647, %v655
      %vm743 = vcmp.eq.f32.partialorder %v742, 8.507059e+37
      %v744 = vand.u32 %v655, 2147483648
      %v745 = vor.u32 1.1754944e-38, %v744
      %v746 = vsel %vm743, %v745, %v741
      %v747 = vmul.f32 1.0, %v746
      %v748 = vrcp.pop %v656
      %v749 = vmul.f32 %v656, %v748
      %v750 = vsub.f32 1.0, %v749
      %v751 = vmul.f32 %v748, %v750
      %v752 = vadd.f32 %v748, %v751
      %vm753 = vweird.f32 %v656
      %vm754 = vweird.f32 %v748
      %vm755 = vmor %vm753, %vm754
      %v756 = vsel %vm755, %v748, %v752
      %v757 = vand.u32 2147483647, %v656
      %vm758 = vcmp.eq.f32.partialorder %v757, 8.507059e+37
      %v759 = vand.u32 %v656, 2147483648
      %v760 = vor.u32 1.1754944e-38, %v759
      %v761 = vsel %vm758, %v760, %v756
      %v762 = vmul.f32 1.0, %v761
      %v763 = vrcp.pop %v657
      %v764 = vmul.f32 %v657, %v763
      %v765 = vsub.f32 1.0, %v764
      %v766 = vmul.f32 %v763, %v765
      %v767 = vadd.f32 %v763, %v766
      %vm768 = vweird.f32 %v657
      %vm769 = vweird.f32 %v763
      %vm770 = vmor %vm768, %vm769
      %v771 = vsel %vm770, %v763, %v767
      %v772 = vand.u32 2147483647, %v657
      %vm773 = vcmp.eq.f32.partialorder %v772, 8.507059e+37
      %v774 = vand.u32 %v657, 2147483648
      %v775 = vor.u32 1.1754944e-38, %v774
      %v776 = vsel %vm773, %v775, %v771
      %v777 = vmul.f32 1.0, %v776
      %v778 = vmul.f32 %v618, %v672
      %v779 = vmul.f32 %v619, %v687
      %v780 = vmul.f32 %v620, %v702
      %v781 = vmul.f32 %v621, %v717
      %v782 = vmul.f32 %v622, %v732
      %v783 = vmul.f32 %v623, %v747
      %v784 = vmul.f32 %v624, %v762
      %v785 = vmul.f32 %v625, %v777
      %v786 = vld [vmem:[%s5] sm:$0xf]
      %v787 = vld [vmem:[%s5 + $0x4] sm:$0xf]
      %v788 = vld [vmem:[%s5 + $0x8] sm:$0xf]
      %v789 = vld [vmem:[%s5 + $0xc] sm:$0xf]
      %v790 = vpack.c.bf16 %v780, %v778
      %v791 = vpack.c.bf16 %v781, %v779
      %v792 = vpack.c.bf16 %v784, %v782
      %v793 = vpack.c.bf16 %v785, %v783
      %v798 = vunpack.c.l.b16 %v786
      %v799 = vunpack.c.l.b16 %v787
      %v800 = vunpack.c.l.b16 %v788
      %v801 = vunpack.c.l.b16 %v789
      %v802 = vpack.c.b16 %v799, %v798
      %v803 = vpack.c.b16 %v801, %v800
      %vm804 = vcmask 261120
      %v806 = vsel %vm804, %v802, 0
      %v809 = vsel %vm804, %v803, 0
      %811 = vmatpush.bf16.msra.mxu0 0
      %812 = vmatpush.bf16.msra.mxu0 0
      %813 = vmatpush.bf16.msra.mxu0 0
      %814 = vmatpush.bf16.msra.mxu0 0
      %815 = vmatpush.bf16.msra.mxu0 0
      %816 = vmatpush.bf16.msra.mxu0 0
      %817 = vmatpush.bf16.msra.mxu0 %v792
      %818 = vmatpush.bf16.msra.mxu0 %v790
      %819 = vmatmul.bf16.gmra.mxu0 %v806
      %v820 = vpop.f32.mrf.mxu0
      %v821 = vadd.f32 0.0, %v820
      %v822 = vpop.f32.mrf.mxu0
      %v823 = vadd.f32 0.0, %v822
      %824 = vmatmul.bf16.gmra.mxu0 %v809
      %v825 = vpop.f32.mrf.mxu0
      %v826 = vadd.f32 0.0, %v825
      %v827 = vpop.f32.mrf.mxu0
      %v828 = vadd.f32 0.0, %v827
      %829 = vdwg.mxu0
      %830 = vmatpush.bf16.msra.mxu0 0
      %831 = vmatpush.bf16.msra.mxu0 0
      %832 = vmatpush.bf16.msra.mxu0 0
      %833 = vmatpush.bf16.msra.mxu0 0
      %834 = vmatpush.bf16.msra.mxu0 0
      %835 = vmatpush.bf16.msra.mxu0 0
      %836 = vmatpush.bf16.msra.mxu0 %v793
      %837 = vmatpush.bf16.msra.mxu0 %v791
      %838 = vmatmul.bf16.gmra.mxu0 %v806
      %v839 = vpop.f32.mrf.mxu0
      %v840 = vadd.f32 0.0, %v839
      %v841 = vpop.f32.mrf.mxu0
      %v842 = vadd.f32 0.0, %v841
      %843 = vmatmul.bf16.gmra.mxu0 %v809
      %v844 = vpop.f32.mrf.mxu0
      %v845 = vadd.f32 0.0, %v844
      %v846 = vpop.f32.mrf.mxu0
      %v847 = vadd.f32 0.0, %v846
      %848 = vdwg.mxu0
      %850 = vset.pattern.permute.xlu0 0
      %851 = vperm.xlu0 %850, %v594
      %v852 = vpop.permute.xlu0 %851
      %855 = vset.pattern.permute.xlu0 0
      %856 = vperm.xlu0 %855, %v595
      %v857 = vpop.permute.xlu0 %856
      %860 = vset.pattern.permute.xlu0 0
      %861 = vperm.xlu0 %860, %v596
      %v862 = vpop.permute.xlu0 %861
      %865 = vset.pattern.permute.xlu0 0
      %866 = vperm.xlu0 %865, %v597
      %v867 = vpop.permute.xlu0 %866
      %v869 = vadd.f32 %v552, %v852
      %v870 = vadd.f32 %v581, %v852
      %v871 = vadd.f32 %v554, %v857
      %v872 = vadd.f32 %v583, %v857
      %v873 = vadd.f32 %v557, %v862
      %v874 = vadd.f32 %v586, %v862
      %v875 = vadd.f32 %v559, %v867
      %v876 = vadd.f32 %v588, %v867
      %v877 = vadd.f32 %v869, %v821
      %v878 = vadd.f32 %v870, %v840
      %v879 = vadd.f32 %v871, %v823
      %v880 = vadd.f32 %v872, %v842
      %v881 = vadd.f32 %v873, %v826
      %v882 = vadd.f32 %v874, %v845
      %v883 = vadd.f32 %v875, %v828
      %v884 = vadd.f32 %v876, %v847
      %v885 = vld [vmem:[%s413] sm:$0xf]
      %v886 = vpack.c.bf16 %v879, %v877
      %v887 = vpack.c.bf16 %v880, %v878
      %v888 = vpack.c.bf16 %v883, %v881
      %v889 = vpack.c.bf16 %v884, %v882
      %v891 = vsel %vm804, %v885, 0
      %893 = vmatpush.bf16.msra.mxu0 0
      %894 = vmatpush.bf16.msra.mxu0 0
      %895 = vmatpush.bf16.msra.mxu0 0
      %896 = vmatpush.bf16.msra.mxu0 0
      %897 = vmatpush.bf16.msra.mxu0 0
      %898 = vmatpush.bf16.msra.mxu0 0
      %899 = vmatpush.bf16.msra.mxu0 %v888
      %900 = vmatpush.bf16.msra.mxu0 %v886
      %901 = vmatmul.bf16.gmra.mxu0 %v891
      %v902 = vpop.f32.mrf.mxu0
      %v903 = vadd.f32 0.0, %v902
      %v904 = vpop.f32.mrf.mxu0
      %905 = vdwg.mxu0
      %906 = vmatpush.bf16.msra.mxu0 0
      %907 = vmatpush.bf16.msra.mxu0 0
      %908 = vmatpush.bf16.msra.mxu0 0
      %909 = vmatpush.bf16.msra.mxu0 0
      %910 = vmatpush.bf16.msra.mxu0 0
      %911 = vmatpush.bf16.msra.mxu0 0
      %912 = vmatpush.bf16.msra.mxu0 %v889
      %913 = vmatpush.bf16.msra.mxu0 %v887
      %914 = vmatmul.bf16.gmra.mxu0 %v891
      %v915 = vpop.f32.mrf.mxu0
      %v916 = vadd.f32 0.0, %v915
      %v917 = vpop.f32.mrf.mxu0
      %918 = vdwg.mxu0
      %v919 = vrot.slane %v903, 4
      %v920 = vmax.f32 %v903, %v919
      %v921 = vrot.slane %v920, 2
      %v922 = vmax.f32 %v920, %v921
      %v923 = vrot.slane %v922, 1
      %v924 = vmax.f32 %v922, %v923
      %v925 = vrot.slane %v916, 4
      %v926 = vmax.f32 %v916, %v925
      %v927 = vrot.slane %v926, 2
      %v928 = vmax.f32 %v926, %v927
      %v929 = vrot.slane %v928, 1
      %v930 = vmax.f32 %v928, %v929
      %v931 = vsub.f32 %v903, %v924
      %v932 = vsub.f32 %v916, %v930
      %v933 = vmul.f32 %v931, 1.442695
      %v934 = vpow.pop %v933
      %v935 = vmul.f32 %v932, 1.442695
      %v936 = vpow.pop %v935
      %v937 = vrot.slane %v934, 4
      %v938 = vadd.f32 %v934, %v937
      %v939 = vrot.slane %v938, 2
      %v940 = vadd.f32 %v938, %v939
      %v941 = vrot.slane %v940, 1
      %v942 = vadd.f32 %v940, %v941
      %v943 = vrot.slane %v936, 4
      %v944 = vadd.f32 %v936, %v943
      %v945 = vrot.slane %v944, 2
      %v946 = vadd.f32 %v944, %v945
      %v947 = vrot.slane %v946, 1
      %v948 = vadd.f32 %v946, %v947
      %v949 = vld [vmem:[%s418] sm:$0xf]
      %v950 = vld [vmem:[%s418 + $0x4] sm:$0xf]
      %v951 = vld [vmem:[%s418 + $0x8] sm:$0xf]
      %v952 = vld [vmem:[%s418 + $0xc] sm:$0xf]
      %v953 = vpack.c.bf16 %v934, %v934
      %v954 = vpack.c.bf16 %v936, %v936
      %v959 = vunpack.c.l.b16 %v949
      %v960 = vunpack.c.l.b16 %v950
      %v961 = vunpack.c.l.b16 %v951
      %v962 = vunpack.c.l.b16 %v952
      %v963 = vpack.c.b16 %v960, %v959
      %v964 = vpack.c.b16 %v962, %v961
      %vm965 = vcmask 64512
      %v967 = vsel %vm965, %v963, 0
      %v970 = vsel %vm965, %v964, 0
      %v973 = vsel %vm525, %v953, 0
      %v976 = vsel %vm525, %v954, 0
      %978 = vmatpush.bf16.msra.mxu0 0
      %979 = vmatpush.bf16.msra.mxu0 0
      %980 = vmatpush.bf16.msra.mxu0 0
      %981 = vmatpush.bf16.msra.mxu0 0
      %982 = vmatpush.bf16.msra.mxu0 0
      %983 = vmatpush.bf16.msra.mxu0 0
      %984 = vmatpush.bf16.msra.mxu0 0
      %985 = vmatpush.bf16.msra.mxu0 %v973
      %986 = vmatmul.bf16.gmra.mxu0 %v967
      %v987 = vpop.f32.mrf.mxu0
      %v988 = vadd.f32 0.0, %v987
      %v989 = vpop.f32.mrf.mxu0
      %v990 = vadd.f32 0.0, %v989
      %991 = vmatmul.bf16.gmra.mxu0 %v970
      %v992 = vpop.f32.mrf.mxu0
      %v993 = vadd.f32 0.0, %v992
      %v994 = vpop.f32.mrf.mxu0
      %v995 = vadd.f32 0.0, %v994
      %996 = vdwg.mxu0
      %997 = vmatpush.bf16.msra.mxu0 0
      %998 = vmatpush.bf16.msra.mxu0 0
      %999 = vmatpush.bf16.msra.mxu0 0
      %1000 = vmatpush.bf16.msra.mxu0 0
      %1001 = vmatpush.bf16.msra.mxu0 0
      %1002 = vmatpush.bf16.msra.mxu0 0
      %1003 = vmatpush.bf16.msra.mxu0 0
      %1004 = vmatpush.bf16.msra.mxu0 %v976
      %1005 = vmatmul.bf16.gmra.mxu0 %v967
      %v1006 = vpop.f32.mrf.mxu0
      %v1007 = vadd.f32 0.0, %v1006
      %v1008 = vpop.f32.mrf.mxu0
      %v1009 = vadd.f32 0.0, %v1008
      %1010 = vmatmul.bf16.gmra.mxu0 %v970
      %v1011 = vpop.f32.mrf.mxu0
      %v1012 = vadd.f32 0.0, %v1011
      %v1013 = vpop.f32.mrf.mxu0
      %v1014 = vadd.f32 0.0, %v1013
      %1015 = vdwg.mxu0
      %v1016 = vrcp.pop %v942
      %v1017 = vmul.f32 %v942, %v1016
      %v1018 = vsub.f32 1.0, %v1017
      %v1019 = vmul.f32 %v1016, %v1018
      %v1020 = vadd.f32 %v1016, %v1019
      %vm1021 = vweird.f32 %v942
      %vm1022 = vweird.f32 %v1016
      %vm1023 = vmor %vm1021, %vm1022
      %v1024 = vsel %vm1023, %v1016, %v1020
      %v1025 = vand.u32 2147483647, %v942
      %vm1026 = vcmp.eq.f32.partialorder %v1025, 8.507059e+37
      %v1027 = vand.u32 %v942, 2147483648
      %v1028 = vor.u32 1.1754944e-38, %v1027
      %v1029 = vsel %vm1026, %v1028, %v1024
      %v1030 = vmul.f32 1.0, %v1029
      %v1031 = vrcp.pop %v948
      %v1032 = vmul.f32 %v948, %v1031
      %v1033 = vsub.f32 1.0, %v1032
      %v1034 = vmul.f32 %v1031, %v1033
      %v1035 = vadd.f32 %v1031, %v1034
      %vm1036 = vweird.f32 %v948
      %vm1037 = vweird.f32 %v1031
      %vm1038 = vmor %vm1036, %vm1037
      %v1039 = vsel %vm1038, %v1031, %v1035
      %v1040 = vand.u32 2147483647, %v948
      %vm1041 = vcmp.eq.f32.partialorder %v1040, 8.507059e+37
      %v1042 = vand.u32 %v948, 2147483648
      %v1043 = vor.u32 1.1754944e-38, %v1042
      %v1044 = vsel %vm1041, %v1043, %v1039
      %v1045 = vmul.f32 1.0, %v1044
      %v1046 = vmul.f32 %v988, %v1030
      %v1047 = vmul.f32 %v1007, %v1045
      %v1048 = vmul.f32 %v990, %v1030
      %v1049 = vmul.f32 %v1009, %v1045
      %v1050 = vmul.f32 %v993, %v1030
      %v1051 = vmul.f32 %v1012, %v1045
      %v1052 = vmul.f32 %v995, %v1030
      %v1053 = vmul.f32 %v1014, %v1045
      %v1054 = vadd.f32 %v877, %v1046
      %v1055 = vadd.f32 %v878, %v1047
      %v1056 = vadd.f32 %v879, %v1048
      %v1057 = vadd.f32 %v880, %v1049
      %v1058 = vadd.f32 %v881, %v1050
      %v1059 = vadd.f32 %v882, %v1051
      %v1060 = vadd.f32 %v883, %v1052
      %v1061 = vadd.f32 %v884, %v1053
      %v1062 = vld [vmem:[%s6] sm:$0xf]
      %v1063 = vld [vmem:[%s6 + $0x4] sm:$0xf]
      %v1064 = vld [vmem:[%s6 + $0x8] sm:$0xf]
      %v1065 = vld [vmem:[%s6 + $0xc] sm:$0xf]
      %v1066 = vld [vmem:[%s6 + $0x10] sm:$0xf]
      %v1067 = vld [vmem:[%s6 + $0x14] sm:$0xf]
      %v1068 = vld [vmem:[%s6 + $0x18] sm:$0xf]
      %v1069 = vld [vmem:[%s6 + $0x1c] sm:$0xf]
      %v1070 = vld [vmem:[%s6 + $0x20] sm:$0xf]
      %v1071 = vld [vmem:[%s6 + $0x24] sm:$0xf]
      %v1072 = vld [vmem:[%s6 + $0x28] sm:$0xf]
      %v1073 = vld [vmem:[%s6 + $0x2c] sm:$0xf]
      %v1074 = vld [vmem:[%s6 + $0x30] sm:$0xf]
      %v1075 = vld [vmem:[%s6 + $0x34] sm:$0xf]
      %v1076 = vld [vmem:[%s6 + $0x38] sm:$0xf]
      %v1077 = vld [vmem:[%s6 + $0x3c] sm:$0xf]
      %v1078 = vpack.c.bf16 %v1056, %v1054
      %v1079 = vpack.c.bf16 %v1057, %v1055
      %v1080 = vpack.c.bf16 %v1060, %v1058
      %v1081 = vpack.c.bf16 %v1061, %v1059
      %v1098 = vunpack.c.l.b16 %v1062
      %v1099 = vunpack.c.l.b16 %v1063
      %v1100 = vunpack.c.l.b16 %v1064
      %v1101 = vunpack.c.l.b16 %v1065
      %v1102 = vunpack.c.l.b16 %v1066
      %v1103 = vunpack.c.l.b16 %v1067
      %v1104 = vunpack.c.l.b16 %v1068
      %v1105 = vunpack.c.l.b16 %v1069
      %v1106 = vunpack.c.l.b16 %v1070
      %v1107 = vunpack.c.l.b16 %v1071
      %v1108 = vunpack.c.l.b16 %v1072
      %v1109 = vunpack.c.l.b16 %v1073
      %v1110 = vunpack.c.l.b16 %v1074
      %v1111 = vunpack.c.l.b16 %v1075
      %v1112 = vunpack.c.l.b16 %v1076
      %v1113 = vunpack.c.l.b16 %v1077
      %v1114 = vpack.c.b16 %v1099, %v1098
      %v1115 = vpack.c.b16 %v1101, %v1100
      %v1116 = vpack.c.b16 %v1103, %v1102
      %v1117 = vpack.c.b16 %v1105, %v1104
      %v1118 = vpack.c.b16 %v1107, %v1106
      %v1119 = vpack.c.b16 %v1109, %v1108
      %v1120 = vpack.c.b16 %v1111, %v1110
      %v1121 = vpack.c.b16 %v1113, %v1112
      %v1123 = vsel %vm804, %v1114, 0
      %v1126 = vsel %vm804, %v1115, 0
      %v1129 = vsel %vm804, %v1116, 0
      %v1132 = vsel %vm804, %v1117, 0
      %v1135 = vsel %vm804, %v1118, 0
      %v1138 = vsel %vm804, %v1119, 0
      %v1141 = vsel %vm804, %v1120, 0
      %v1144 = vsel %vm804, %v1121, 0
      %1146 = vmatpush.bf16.msra.mxu0 0
      %1147 = vmatpush.bf16.msra.mxu0 0
      %1148 = vmatpush.bf16.msra.mxu0 0
      %1149 = vmatpush.bf16.msra.mxu0 0
      %1150 = vmatpush.bf16.msra.mxu0 0
      %1151 = vmatpush.bf16.msra.mxu0 0
      %1152 = vmatpush.bf16.msra.mxu0 %v1080
      %1153 = vmatpush.bf16.msra.mxu0 %v1078
      %1154 = vmatmul.bf16.gmra.mxu0 %v1123
      %v1155 = vpop.f32.mrf.mxu0
      %v1156 = vadd.f32 0.0, %v1155
      %v1157 = vpop.f32.mrf.mxu0
      %v1158 = vadd.f32 0.0, %v1157
      %1159 = vmatmul.bf16.gmra.mxu0 %v1126
      %v1160 = vpop.f32.mrf.mxu0
      %v1161 = vadd.f32 0.0, %v1160
      %v1162 = vpop.f32.mrf.mxu0
      %v1163 = vadd.f32 0.0, %v1162
      %1164 = vmatmul.bf16.gmra.mxu0 %v1129
      %v1165 = vpop.f32.mrf.mxu0
      %v1166 = vadd.f32 0.0, %v1165
      %v1167 = vpop.f32.mrf.mxu0
      %v1168 = vadd.f32 0.0, %v1167
      %1169 = vmatmul.bf16.gmra.mxu0 %v1132
      %v1170 = vpop.f32.mrf.mxu0
      %v1171 = vadd.f32 0.0, %v1170
      %v1172 = vpop.f32.mrf.mxu0
      %v1173 = vadd.f32 0.0, %v1172
      %1174 = vmatmul.bf16.gmra.mxu0 %v1135
      %v1175 = vpop.f32.mrf.mxu0
      %v1176 = vadd.f32 0.0, %v1175
      %v1177 = vpop.f32.mrf.mxu0
      %v1178 = vadd.f32 0.0, %v1177
      %1179 = vmatmul.bf16.gmra.mxu0 %v1138
      %v1180 = vpop.f32.mrf.mxu0
      %v1181 = vadd.f32 0.0, %v1180
      %v1182 = vpop.f32.mrf.mxu0
      %v1183 = vadd.f32 0.0, %v1182
      %1184 = vmatmul.bf16.gmra.mxu0 %v1141
      %v1185 = vpop.f32.mrf.mxu0
      %v1186 = vadd.f32 0.0, %v1185
      %v1187 = vpop.f32.mrf.mxu0
      %v1188 = vadd.f32 0.0, %v1187
      %1189 = vmatmul.bf16.gmra.mxu0 %v1144
      %v1190 = vpop.f32.mrf.mxu0
      %v1191 = vadd.f32 0.0, %v1190
      %v1192 = vpop.f32.mrf.mxu0
      %v1193 = vadd.f32 0.0, %v1192
      %1194 = vdwg.mxu0
      %1195 = vmatpush.bf16.msra.mxu0 0
      %1196 = vmatpush.bf16.msra.mxu0 0
      %1197 = vmatpush.bf16.msra.mxu0 0
      %1198 = vmatpush.bf16.msra.mxu0 0
      %1199 = vmatpush.bf16.msra.mxu0 0
      %1200 = vmatpush.bf16.msra.mxu0 0
      %1201 = vmatpush.bf16.msra.mxu0 %v1081
      %1202 = vmatpush.bf16.msra.mxu0 %v1079
      %1203 = vmatmul.bf16.gmra.mxu0 %v1123
      %v1204 = vpop.f32.mrf.mxu0
      %v1205 = vadd.f32 0.0, %v1204
      %v1206 = vpop.f32.mrf.mxu0
      %v1207 = vadd.f32 0.0, %v1206
      %1208 = vmatmul.bf16.gmra.mxu0 %v1126
      %v1209 = vpop.f32.mrf.mxu0
      %v1210 = vadd.f32 0.0, %v1209
      %v1211 = vpop.f32.mrf.mxu0
      %v1212 = vadd.f32 0.0, %v1211
      %1213 = vmatmul.bf16.gmra.mxu0 %v1129
      %v1214 = vpop.f32.mrf.mxu0
      %v1215 = vadd.f32 0.0, %v1214
      %v1216 = vpop.f32.mrf.mxu0
      %v1217 = vadd.f32 0.0, %v1216
      %1218 = vmatmul.bf16.gmra.mxu0 %v1132
      %v1219 = vpop.f32.mrf.mxu0
      %v1220 = vadd.f32 0.0, %v1219
      %v1221 = vpop.f32.mrf.mxu0
      %v1222 = vadd.f32 0.0, %v1221
      %1223 = vmatmul.bf16.gmra.mxu0 %v1135
      %v1224 = vpop.f32.mrf.mxu0
      %v1225 = vadd.f32 0.0, %v1224
      %v1226 = vpop.f32.mrf.mxu0
      %v1227 = vadd.f32 0.0, %v1226
      %1228 = vmatmul.bf16.gmra.mxu0 %v1138
      %v1229 = vpop.f32.mrf.mxu0
      %v1230 = vadd.f32 0.0, %v1229
      %v1231 = vpop.f32.mrf.mxu0
      %v1232 = vadd.f32 0.0, %v1231
      %1233 = vmatmul.bf16.gmra.mxu0 %v1141
      %v1234 = vpop.f32.mrf.mxu0
      %v1235 = vadd.f32 0.0, %v1234
      %v1236 = vpop.f32.mrf.mxu0
      %v1237 = vadd.f32 0.0, %v1236
      %1238 = vmatmul.bf16.gmra.mxu0 %v1144
      %v1239 = vpop.f32.mrf.mxu0
      %v1240 = vadd.f32 0.0, %v1239
      %v1241 = vpop.f32.mrf.mxu0
      %v1242 = vadd.f32 0.0, %v1241
      %1243 = vdwg.mxu0
      %v1244 = vxor.u32 %v1156, 2147483648
      %v1245 = vxor.u32 %v1205, 2147483648
      %v1246 = vxor.u32 %v1158, 2147483648
      %v1247 = vxor.u32 %v1207, 2147483648
      %v1248 = vxor.u32 %v1161, 2147483648
      %v1249 = vxor.u32 %v1210, 2147483648
      %v1250 = vxor.u32 %v1163, 2147483648
      %v1251 = vxor.u32 %v1212, 2147483648
      %v1252 = vxor.u32 %v1166, 2147483648
      %v1253 = vxor.u32 %v1215, 2147483648
      %v1254 = vxor.u32 %v1168, 2147483648
      %v1255 = vxor.u32 %v1217, 2147483648
      %v1256 = vxor.u32 %v1171, 2147483648
      %v1257 = vxor.u32 %v1220, 2147483648
      %v1258 = vxor.u32 %v1173, 2147483648
      %v1259 = vxor.u32 %v1222, 2147483648
      %v1260 = vxor.u32 %v1176, 2147483648
      %v1261 = vxor.u32 %v1225, 2147483648
      %v1262 = vxor.u32 %v1178, 2147483648
      %v1263 = vxor.u32 %v1227, 2147483648
      %v1264 = vxor.u32 %v1181, 2147483648
      %v1265 = vxor.u32 %v1230, 2147483648
      %v1266 = vxor.u32 %v1183, 2147483648
      %v1267 = vxor.u32 %v1232, 2147483648
      %v1268 = vxor.u32 %v1186, 2147483648
      %v1269 = vxor.u32 %v1235, 2147483648
      %v1270 = vxor.u32 %v1188, 2147483648
      %v1271 = vxor.u32 %v1237, 2147483648
      %v1272 = vxor.u32 %v1191, 2147483648
      %v1273 = vxor.u32 %v1240, 2147483648
      %v1274 = vxor.u32 %v1193, 2147483648
      %v1275 = vxor.u32 %v1242, 2147483648
      %v1276 = vmul.f32 %v1244, 1.442695
      %v1277 = vpow.pop %v1276
      %v1278 = vmul.f32 %v1245, 1.442695
      %v1279 = vpow.pop %v1278
      %v1280 = vmul.f32 %v1246, 1.442695
      %v1281 = vpow.pop %v1280
      %v1282 = vmul.f32 %v1247, 1.442695
      %v1283 = vpow.pop %v1282
      %v1284 = vmul.f32 %v1248, 1.442695
      %v1285 = vpow.pop %v1284
      %v1286 = vmul.f32 %v1249, 1.442695
      %v1287 = vpow.pop %v1286
      %v1288 = vmul.f32 %v1250, 1.442695
      %v1289 = vpow.pop %v1288
      %v1290 = vmul.f32 %v1251, 1.442695
      %v1291 = vpow.pop %v1290
      %v1292 = vmul.f32 %v1252, 1.442695
      %v1293 = vpow.pop %v1292
      %v1294 = vmul.f32 %v1253, 1.442695
      %v1295 = vpow.pop %v1294
      %v1296 = vmul.f32 %v1254, 1.442695
      %v1297 = vpow.pop %v1296
      %v1298 = vmul.f32 %v1255, 1.442695
      %v1299 = vpow.pop %v1298
      %v1300 = vmul.f32 %v1256, 1.442695
      %v1301 = vpow.pop %v1300
      %v1302 = vmul.f32 %v1257, 1.442695
      %v1303 = vpow.pop %v1302
      %v1304 = vmul.f32 %v1258, 1.442695
      %v1305 = vpow.pop %v1304
      %v1306 = vmul.f32 %v1259, 1.442695
      %v1307 = vpow.pop %v1306
      %v1308 = vmul.f32 %v1260, 1.442695
      %v1309 = vpow.pop %v1308
      %v1310 = vmul.f32 %v1261, 1.442695
      %v1311 = vpow.pop %v1310
      %v1312 = vmul.f32 %v1262, 1.442695
      %v1313 = vpow.pop %v1312
      %v1314 = vmul.f32 %v1263, 1.442695
      %v1315 = vpow.pop %v1314
      %v1316 = vmul.f32 %v1264, 1.442695
      %v1317 = vpow.pop %v1316
      %v1318 = vmul.f32 %v1265, 1.442695
      %v1319 = vpow.pop %v1318
      %v1320 = vmul.f32 %v1266, 1.442695
      %v1321 = vpow.pop %v1320
      %v1322 = vmul.f32 %v1267, 1.442695
      %v1323 = vpow.pop %v1322
      %v1324 = vmul.f32 %v1268, 1.442695
      %v1325 = vpow.pop %v1324
      %v1326 = vmul.f32 %v1269, 1.442695
      %v1327 = vpow.pop %v1326
      %v1328 = vmul.f32 %v1270, 1.442695
      %v1329 = vpow.pop %v1328
      %v1330 = vmul.f32 %v1271, 1.442695
      %v1331 = vpow.pop %v1330
      %v1332 = vmul.f32 %v1272, 1.442695
      %v1333 = vpow.pop %v1332
      %v1334 = vmul.f32 %v1273, 1.442695
      %v1335 = vpow.pop %v1334
      %v1336 = vmul.f32 %v1274, 1.442695
      %v1337 = vpow.pop %v1336
      %v1338 = vmul.f32 %v1275, 1.442695
      %v1339 = vpow.pop %v1338
      %v1340 = vadd.f32 %v1277, 1.0
      %v1341 = vadd.f32 %v1279, 1.0
      %v1342 = vadd.f32 %v1281, 1.0
      %v1343 = vadd.f32 %v1283, 1.0
      %v1344 = vadd.f32 %v1285, 1.0
      %v1345 = vadd.f32 %v1287, 1.0
      %v1346 = vadd.f32 %v1289, 1.0
      %v1347 = vadd.f32 %v1291, 1.0
      %v1348 = vadd.f32 %v1293, 1.0
      %v1349 = vadd.f32 %v1295, 1.0
      %v1350 = vadd.f32 %v1297, 1.0
      %v1351 = vadd.f32 %v1299, 1.0
      %v1352 = vadd.f32 %v1301, 1.0
      %v1353 = vadd.f32 %v1303, 1.0
      %v1354 = vadd.f32 %v1305, 1.0
      %v1355 = vadd.f32 %v1307, 1.0
      %v1356 = vadd.f32 %v1309, 1.0
      %v1357 = vadd.f32 %v1311, 1.0
      %v1358 = vadd.f32 %v1313, 1.0
      %v1359 = vadd.f32 %v1315, 1.0
      %v1360 = vadd.f32 %v1317, 1.0
      %v1361 = vadd.f32 %v1319, 1.0
      %v1362 = vadd.f32 %v1321, 1.0
      %v1363 = vadd.f32 %v1323, 1.0
      %v1364 = vadd.f32 %v1325, 1.0
      %v1365 = vadd.f32 %v1327, 1.0
      %v1366 = vadd.f32 %v1329, 1.0
      %v1367 = vadd.f32 %v1331, 1.0
      %v1368 = vadd.f32 %v1333, 1.0
      %v1369 = vadd.f32 %v1335, 1.0
      %v1370 = vadd.f32 %v1337, 1.0
      %v1371 = vadd.f32 %v1339, 1.0
      %v1372 = vrcp.pop %v1340
      %v1373 = vmul.f32 %v1340, %v1372
      %v1374 = vsub.f32 1.0, %v1373
      %v1375 = vmul.f32 %v1372, %v1374
      %v1376 = vadd.f32 %v1372, %v1375
      %vm1377 = vweird.f32 %v1340
      %vm1378 = vweird.f32 %v1372
      %vm1379 = vmor %vm1377, %vm1378
      %v1380 = vsel %vm1379, %v1372, %v1376
      %v1381 = vand.u32 2147483647, %v1340
      %vm1382 = vcmp.eq.f32.partialorder %v1381, 8.507059e+37
      %v1383 = vand.u32 %v1340, 2147483648
      %v1384 = vor.u32 1.1754944e-38, %v1383
      %v1385 = vsel %vm1382, %v1384, %v1380
      %v1386 = vmul.f32 1.0, %v1385
      %v1387 = vrcp.pop %v1341
      %v1388 = vmul.f32 %v1341, %v1387
      %v1389 = vsub.f32 1.0, %v1388
      %v1390 = vmul.f32 %v1387, %v1389
      %v1391 = vadd.f32 %v1387, %v1390
      %vm1392 = vweird.f32 %v1341
      %vm1393 = vweird.f32 %v1387
      %vm1394 = vmor %vm1392, %vm1393
      %v1395 = vsel %vm1394, %v1387, %v1391
      %v1396 = vand.u32 2147483647, %v1341
      %vm1397 = vcmp.eq.f32.partialorder %v1396, 8.507059e+37
      %v1398 = vand.u32 %v1341, 2147483648
      %v1399 = vor.u32 1.1754944e-38, %v1398
      %v1400 = vsel %vm1397, %v1399, %v1395
      %v1401 = vmul.f32 1.0, %v1400
      %v1402 = vrcp.pop %v1342
      %v1403 = vmul.f32 %v1342, %v1402
      %v1404 = vsub.f32 1.0, %v1403
      %v1405 = vmul.f32 %v1402, %v1404
      %v1406 = vadd.f32 %v1402, %v1405
      %vm1407 = vweird.f32 %v1342
      %vm1408 = vweird.f32 %v1402
      %vm1409 = vmor %vm1407, %vm1408
      %v1410 = vsel %vm1409, %v1402, %v1406
      %v1411 = vand.u32 2147483647, %v1342
      %vm1412 = vcmp.eq.f32.partialorder %v1411, 8.507059e+37
      %v1413 = vand.u32 %v1342, 2147483648
      %v1414 = vor.u32 1.1754944e-38, %v1413
      %v1415 = vsel %vm1412, %v1414, %v1410
      %v1416 = vmul.f32 1.0, %v1415
      %v1417 = vrcp.pop %v1343
      %v1418 = vmul.f32 %v1343, %v1417
      %v1419 = vsub.f32 1.0, %v1418
      %v1420 = vmul.f32 %v1417, %v1419
      %v1421 = vadd.f32 %v1417, %v1420
      %vm1422 = vweird.f32 %v1343
      %vm1423 = vweird.f32 %v1417
      %vm1424 = vmor %vm1422, %vm1423
      %v1425 = vsel %vm1424, %v1417, %v1421
      %v1426 = vand.u32 2147483647, %v1343
      %vm1427 = vcmp.eq.f32.partialorder %v1426, 8.507059e+37
      %v1428 = vand.u32 %v1343, 2147483648
      %v1429 = vor.u32 1.1754944e-38, %v1428
      %v1430 = vsel %vm1427, %v1429, %v1425
      %v1431 = vmul.f32 1.0, %v1430
      %v1432 = vrcp.pop %v1344
      %v1433 = vmul.f32 %v1344, %v1432
      %v1434 = vsub.f32 1.0, %v1433
      %v1435 = vmul.f32 %v1432, %v1434
      %v1436 = vadd.f32 %v1432, %v1435
      %vm1437 = vweird.f32 %v1344
      %vm1438 = vweird.f32 %v1432
      %vm1439 = vmor %vm1437, %vm1438
      %v1440 = vsel %vm1439, %v1432, %v1436
      %v1441 = vand.u32 2147483647, %v1344
      %vm1442 = vcmp.eq.f32.partialorder %v1441, 8.507059e+37
      %v1443 = vand.u32 %v1344, 2147483648
      %v1444 = vor.u32 1.1754944e-38, %v1443
      %v1445 = vsel %vm1442, %v1444, %v1440
      %v1446 = vmul.f32 1.0, %v1445
      %v1447 = vrcp.pop %v1345
      %v1448 = vmul.f32 %v1345, %v1447
      %v1449 = vsub.f32 1.0, %v1448
      %v1450 = vmul.f32 %v1447, %v1449
      %v1451 = vadd.f32 %v1447, %v1450
      %vm1452 = vweird.f32 %v1345
      %vm1453 = vweird.f32 %v1447
      %vm1454 = vmor %vm1452, %vm1453
      %v1455 = vsel %vm1454, %v1447, %v1451
      %v1456 = vand.u32 2147483647, %v1345
      %vm1457 = vcmp.eq.f32.partialorder %v1456, 8.507059e+37
      %v1458 = vand.u32 %v1345, 2147483648
      %v1459 = vor.u32 1.1754944e-38, %v1458
      %v1460 = vsel %vm1457, %v1459, %v1455
      %v1461 = vmul.f32 1.0, %v1460
      %v1462 = vrcp.pop %v1346
      %v1463 = vmul.f32 %v1346, %v1462
      %v1464 = vsub.f32 1.0, %v1463
      %v1465 = vmul.f32 %v1462, %v1464
      %v1466 = vadd.f32 %v1462, %v1465
      %vm1467 = vweird.f32 %v1346
      %vm1468 = vweird.f32 %v1462
      %vm1469 = vmor %vm1467, %vm1468
      %v1470 = vsel %vm1469, %v1462, %v1466
      %v1471 = vand.u32 2147483647, %v1346
      %vm1472 = vcmp.eq.f32.partialorder %v1471, 8.507059e+37
      %v1473 = vand.u32 %v1346, 2147483648
      %v1474 = vor.u32 1.1754944e-38, %v1473
      %v1475 = vsel %vm1472, %v1474, %v1470
      %v1476 = vmul.f32 1.0, %v1475
      %v1477 = vrcp.pop %v1347
      %v1478 = vmul.f32 %v1347, %v1477
      %v1479 = vsub.f32 1.0, %v1478
      %v1480 = vmul.f32 %v1477, %v1479
      %v1481 = vadd.f32 %v1477, %v1480
      %vm1482 = vweird.f32 %v1347
      %vm1483 = vweird.f32 %v1477
      %vm1484 = vmor %vm1482, %vm1483
      %v1485 = vsel %vm1484, %v1477, %v1481
      %v1486 = vand.u32 2147483647, %v1347
      %vm1487 = vcmp.eq.f32.partialorder %v1486, 8.507059e+37
      %v1488 = vand.u32 %v1347, 2147483648
      %v1489 = vor.u32 1.1754944e-38, %v1488
      %v1490 = vsel %vm1487, %v1489, %v1485
      %v1491 = vmul.f32 1.0, %v1490
      %v1492 = vrcp.pop %v1348
      %v1493 = vmul.f32 %v1348, %v1492
      %v1494 = vsub.f32 1.0, %v1493
      %v1495 = vmul.f32 %v1492, %v1494
      %v1496 = vadd.f32 %v1492, %v1495
      %vm1497 = vweird.f32 %v1348
      %vm1498 = vweird.f32 %v1492
      %vm1499 = vmor %vm1497, %vm1498
      %v1500 = vsel %vm1499, %v1492, %v1496
      %v1501 = vand.u32 2147483647, %v1348
      %vm1502 = vcmp.eq.f32.partialorder %v1501, 8.507059e+37
      %v1503 = vand.u32 %v1348, 2147483648
      %v1504 = vor.u32 1.1754944e-38, %v1503
      %v1505 = vsel %vm1502, %v1504, %v1500
      %v1506 = vmul.f32 1.0, %v1505
      %v1507 = vrcp.pop %v1349
      %v1508 = vmul.f32 %v1349, %v1507
      %v1509 = vsub.f32 1.0, %v1508
      %v1510 = vmul.f32 %v1507, %v1509
      %v1511 = vadd.f32 %v1507, %v1510
      %vm1512 = vweird.f32 %v1349
      %vm1513 = vweird.f32 %v1507
      %vm1514 = vmor %vm1512, %vm1513
      %v1515 = vsel %vm1514, %v1507, %v1511
      %v1516 = vand.u32 2147483647, %v1349
      %vm1517 = vcmp.eq.f32.partialorder %v1516, 8.507059e+37
      %v1518 = vand.u32 %v1349, 2147483648
      %v1519 = vor.u32 1.1754944e-38, %v1518
      %v1520 = vsel %vm1517, %v1519, %v1515
      %v1521 = vmul.f32 1.0, %v1520
      %v1522 = vrcp.pop %v1350
      %v1523 = vmul.f32 %v1350, %v1522
      %v1524 = vsub.f32 1.0, %v1523
      %v1525 = vmul.f32 %v1522, %v1524
      %v1526 = vadd.f32 %v1522, %v1525
      %vm1527 = vweird.f32 %v1350
      %vm1528 = vweird.f32 %v1522
      %vm1529 = vmor %vm1527, %vm1528
      %v1530 = vsel %vm1529, %v1522, %v1526
      %v1531 = vand.u32 2147483647, %v1350
      %vm1532 = vcmp.eq.f32.partialorder %v1531, 8.507059e+37
      %v1533 = vand.u32 %v1350, 2147483648
      %v1534 = vor.u32 1.1754944e-38, %v1533
      %v1535 = vsel %vm1532, %v1534, %v1530
      %v1536 = vmul.f32 1.0, %v1535
      %v1537 = vrcp.pop %v1351
      %v1538 = vmul.f32 %v1351, %v1537
      %v1539 = vsub.f32 1.0, %v1538
      %v1540 = vmul.f32 %v1537, %v1539
      %v1541 = vadd.f32 %v1537, %v1540
      %vm1542 = vweird.f32 %v1351
      %vm1543 = vweird.f32 %v1537
      %vm1544 = vmor %vm1542, %vm1543
      %v1545 = vsel %vm1544, %v1537, %v1541
      %v1546 = vand.u32 2147483647, %v1351
      %vm1547 = vcmp.eq.f32.partialorder %v1546, 8.507059e+37
      %v1548 = vand.u32 %v1351, 2147483648
      %v1549 = vor.u32 1.1754944e-38, %v1548
      %v1550 = vsel %vm1547, %v1549, %v1545
      %v1551 = vmul.f32 1.0, %v1550
      %v1552 = vrcp.pop %v1352
      %v1553 = vmul.f32 %v1352, %v1552
      %v1554 = vsub.f32 1.0, %v1553
      %v1555 = vmul.f32 %v1552, %v1554
      %v1556 = vadd.f32 %v1552, %v1555
      %vm1557 = vweird.f32 %v1352
      %vm1558 = vweird.f32 %v1552
      %vm1559 = vmor %vm1557, %vm1558
      %v1560 = vsel %vm1559, %v1552, %v1556
      %v1561 = vand.u32 2147483647, %v1352
      %vm1562 = vcmp.eq.f32.partialorder %v1561, 8.507059e+37
      %v1563 = vand.u32 %v1352, 2147483648
      %v1564 = vor.u32 1.1754944e-38, %v1563
      %v1565 = vsel %vm1562, %v1564, %v1560
      %v1566 = vmul.f32 1.0, %v1565
      %v1567 = vrcp.pop %v1353
      %v1568 = vmul.f32 %v1353, %v1567
      %v1569 = vsub.f32 1.0, %v1568
      %v1570 = vmul.f32 %v1567, %v1569
      %v1571 = vadd.f32 %v1567, %v1570
      %vm1572 = vweird.f32 %v1353
      %vm1573 = vweird.f32 %v1567
      %vm1574 = vmor %vm1572, %vm1573
      %v1575 = vsel %vm1574, %v1567, %v1571
      %v1576 = vand.u32 2147483647, %v1353
      %vm1577 = vcmp.eq.f32.partialorder %v1576, 8.507059e+37
      %v1578 = vand.u32 %v1353, 2147483648
      %v1579 = vor.u32 1.1754944e-38, %v1578
      %v1580 = vsel %vm1577, %v1579, %v1575
      %v1581 = vmul.f32 1.0, %v1580
      %v1582 = vrcp.pop %v1354
      %v1583 = vmul.f32 %v1354, %v1582
      %v1584 = vsub.f32 1.0, %v1583
      %v1585 = vmul.f32 %v1582, %v1584
      %v1586 = vadd.f32 %v1582, %v1585
      %vm1587 = vweird.f32 %v1354
      %vm1588 = vweird.f32 %v1582
      %vm1589 = vmor %vm1587, %vm1588
      %v1590 = vsel %vm1589, %v1582, %v1586
      %v1591 = vand.u32 2147483647, %v1354
      %vm1592 = vcmp.eq.f32.partialorder %v1591, 8.507059e+37
      %v1593 = vand.u32 %v1354, 2147483648
      %v1594 = vor.u32 1.1754944e-38, %v1593
      %v1595 = vsel %vm1592, %v1594, %v1590
      %v1596 = vmul.f32 1.0, %v1595
      %v1597 = vrcp.pop %v1355
      %v1598 = vmul.f32 %v1355, %v1597
      %v1599 = vsub.f32 1.0, %v1598
      %v1600 = vmul.f32 %v1597, %v1599
      %v1601 = vadd.f32 %v1597, %v1600
      %vm1602 = vweird.f32 %v1355
      %vm1603 = vweird.f32 %v1597
      %vm1604 = vmor %vm1602, %vm1603
      %v1605 = vsel %vm1604, %v1597, %v1601
      %v1606 = vand.u32 2147483647, %v1355
      %vm1607 = vcmp.eq.f32.partialorder %v1606, 8.507059e+37
      %v1608 = vand.u32 %v1355, 2147483648
      %v1609 = vor.u32 1.1754944e-38, %v1608
      %v1610 = vsel %vm1607, %v1609, %v1605
      %v1611 = vmul.f32 1.0, %v1610
      %v1612 = vrcp.pop %v1356
      %v1613 = vmul.f32 %v1356, %v1612
      %v1614 = vsub.f32 1.0, %v1613
      %v1615 = vmul.f32 %v1612, %v1614
      %v1616 = vadd.f32 %v1612, %v1615
      %vm1617 = vweird.f32 %v1356
      %vm1618 = vweird.f32 %v1612
      %vm1619 = vmor %vm1617, %vm1618
      %v1620 = vsel %vm1619, %v1612, %v1616
      %v1621 = vand.u32 2147483647, %v1356
      %vm1622 = vcmp.eq.f32.partialorder %v1621, 8.507059e+37
      %v1623 = vand.u32 %v1356, 2147483648
      %v1624 = vor.u32 1.1754944e-38, %v1623
      %v1625 = vsel %vm1622, %v1624, %v1620
      %v1626 = vmul.f32 1.0, %v1625
      %v1627 = vrcp.pop %v1357
      %v1628 = vmul.f32 %v1357, %v1627
      %v1629 = vsub.f32 1.0, %v1628
      %v1630 = vmul.f32 %v1627, %v1629
      %v1631 = vadd.f32 %v1627, %v1630
      %vm1632 = vweird.f32 %v1357
      %vm1633 = vweird.f32 %v1627
      %vm1634 = vmor %vm1632, %vm1633
      %v1635 = vsel %vm1634, %v1627, %v1631
      %v1636 = vand.u32 2147483647, %v1357
      %vm1637 = vcmp.eq.f32.partialorder %v1636, 8.507059e+37
      %v1638 = vand.u32 %v1357, 2147483648
      %v1639 = vor.u32 1.1754944e-38, %v1638
      %v1640 = vsel %vm1637, %v1639, %v1635
      %v1641 = vmul.f32 1.0, %v1640
      %v1642 = vrcp.pop %v1358
      %v1643 = vmul.f32 %v1358, %v1642
      %v1644 = vsub.f32 1.0, %v1643
      %v1645 = vmul.f32 %v1642, %v1644
      %v1646 = vadd.f32 %v1642, %v1645
      %vm1647 = vweird.f32 %v1358
      %vm1648 = vweird.f32 %v1642
      %vm1649 = vmor %vm1647, %vm1648
      %v1650 = vsel %vm1649, %v1642, %v1646
      %v1651 = vand.u32 2147483647, %v1358
      %vm1652 = vcmp.eq.f32.partialorder %v1651, 8.507059e+37
      %v1653 = vand.u32 %v1358, 2147483648
      %v1654 = vor.u32 1.1754944e-38, %v1653
      %v1655 = vsel %vm1652, %v1654, %v1650
      %v1656 = vmul.f32 1.0, %v1655
      %v1657 = vrcp.pop %v1359
      %v1658 = vmul.f32 %v1359, %v1657
      %v1659 = vsub.f32 1.0, %v1658
      %v1660 = vmul.f32 %v1657, %v1659
      %v1661 = vadd.f32 %v1657, %v1660
      %vm1662 = vweird.f32 %v1359
      %vm1663 = vweird.f32 %v1657
      %vm1664 = vmor %vm1662, %vm1663
      %v1665 = vsel %vm1664, %v1657, %v1661
      %v1666 = vand.u32 2147483647, %v1359
      %vm1667 = vcmp.eq.f32.partialorder %v1666, 8.507059e+37
      %v1668 = vand.u32 %v1359, 2147483648
      %v1669 = vor.u32 1.1754944e-38, %v1668
      %v1670 = vsel %vm1667, %v1669, %v1665
      %v1671 = vmul.f32 1.0, %v1670
      %v1672 = vrcp.pop %v1360
      %v1673 = vmul.f32 %v1360, %v1672
      %v1674 = vsub.f32 1.0, %v1673
      %v1675 = vmul.f32 %v1672, %v1674
      %v1676 = vadd.f32 %v1672, %v1675
      %vm1677 = vweird.f32 %v1360
      %vm1678 = vweird.f32 %v1672
      %vm1679 = vmor %vm1677, %vm1678
      %v1680 = vsel %vm1679, %v1672, %v1676
      %v1681 = vand.u32 2147483647, %v1360
      %vm1682 = vcmp.eq.f32.partialorder %v1681, 8.507059e+37
      %v1683 = vand.u32 %v1360, 2147483648
      %v1684 = vor.u32 1.1754944e-38, %v1683
      %v1685 = vsel %vm1682, %v1684, %v1680
      %v1686 = vmul.f32 1.0, %v1685
      %v1687 = vrcp.pop %v1361
      %v1688 = vmul.f32 %v1361, %v1687
      %v1689 = vsub.f32 1.0, %v1688
      %v1690 = vmul.f32 %v1687, %v1689
      %v1691 = vadd.f32 %v1687, %v1690
      %vm1692 = vweird.f32 %v1361
      %vm1693 = vweird.f32 %v1687
      %vm1694 = vmor %vm1692, %vm1693
      %v1695 = vsel %vm1694, %v1687, %v1691
      %v1696 = vand.u32 2147483647, %v1361
      %vm1697 = vcmp.eq.f32.partialorder %v1696, 8.507059e+37
      %v1698 = vand.u32 %v1361, 2147483648
      %v1699 = vor.u32 1.1754944e-38, %v1698
      %v1700 = vsel %vm1697, %v1699, %v1695
      %v1701 = vmul.f32 1.0, %v1700
      %v1702 = vrcp.pop %v1362
      %v1703 = vmul.f32 %v1362, %v1702
      %v1704 = vsub.f32 1.0, %v1703
      %v1705 = vmul.f32 %v1702, %v1704
      %v1706 = vadd.f32 %v1702, %v1705
      %vm1707 = vweird.f32 %v1362
      %vm1708 = vweird.f32 %v1702
      %vm1709 = vmor %vm1707, %vm1708
      %v1710 = vsel %vm1709, %v1702, %v1706
      %v1711 = vand.u32 2147483647, %v1362
      %vm1712 = vcmp.eq.f32.partialorder %v1711, 8.507059e+37
      %v1713 = vand.u32 %v1362, 2147483648
      %v1714 = vor.u32 1.1754944e-38, %v1713
      %v1715 = vsel %vm1712, %v1714, %v1710
      %v1716 = vmul.f32 1.0, %v1715
      %v1717 = vrcp.pop %v1363
      %v1718 = vmul.f32 %v1363, %v1717
      %v1719 = vsub.f32 1.0, %v1718
      %v1720 = vmul.f32 %v1717, %v1719
      %v1721 = vadd.f32 %v1717, %v1720
      %vm1722 = vweird.f32 %v1363
      %vm1723 = vweird.f32 %v1717
      %vm1724 = vmor %vm1722, %vm1723
      %v1725 = vsel %vm1724, %v1717, %v1721
      %v1726 = vand.u32 2147483647, %v1363
      %vm1727 = vcmp.eq.f32.partialorder %v1726, 8.507059e+37
      %v1728 = vand.u32 %v1363, 2147483648
      %v1729 = vor.u32 1.1754944e-38, %v1728
      %v1730 = vsel %vm1727, %v1729, %v1725
      %v1731 = vmul.f32 1.0, %v1730
      %v1732 = vrcp.pop %v1364
      %v1733 = vmul.f32 %v1364, %v1732
      %v1734 = vsub.f32 1.0, %v1733
      %v1735 = vmul.f32 %v1732, %v1734
      %v1736 = vadd.f32 %v1732, %v1735
      %vm1737 = vweird.f32 %v1364
      %vm1738 = vweird.f32 %v1732
      %vm1739 = vmor %vm1737, %vm1738
      %v1740 = vsel %vm1739, %v1732, %v1736
      %v1741 = vand.u32 2147483647, %v1364
      %vm1742 = vcmp.eq.f32.partialorder %v1741, 8.507059e+37
      %v1743 = vand.u32 %v1364, 2147483648
      %v1744 = vor.u32 1.1754944e-38, %v1743
      %v1745 = vsel %vm1742, %v1744, %v1740
      %v1746 = vmul.f32 1.0, %v1745
      %v1747 = vrcp.pop %v1365
      %v1748 = vmul.f32 %v1365, %v1747
      %v1749 = vsub.f32 1.0, %v1748
      %v1750 = vmul.f32 %v1747, %v1749
      %v1751 = vadd.f32 %v1747, %v1750
      %vm1752 = vweird.f32 %v1365
      %vm1753 = vweird.f32 %v1747
      %vm1754 = vmor %vm1752, %vm1753
      %v1755 = vsel %vm1754, %v1747, %v1751
      %v1756 = vand.u32 2147483647, %v1365
      %vm1757 = vcmp.eq.f32.partialorder %v1756, 8.507059e+37
      %v1758 = vand.u32 %v1365, 2147483648
      %v1759 = vor.u32 1.1754944e-38, %v1758
      %v1760 = vsel %vm1757, %v1759, %v1755
      %v1761 = vmul.f32 1.0, %v1760
      %v1762 = vrcp.pop %v1366
      %v1763 = vmul.f32 %v1366, %v1762
      %v1764 = vsub.f32 1.0, %v1763
      %v1765 = vmul.f32 %v1762, %v1764
      %v1766 = vadd.f32 %v1762, %v1765
      %vm1767 = vweird.f32 %v1366
      %vm1768 = vweird.f32 %v1762
      %vm1769 = vmor %vm1767, %vm1768
      %v1770 = vsel %vm1769, %v1762, %v1766
      %v1771 = vand.u32 2147483647, %v1366
      %vm1772 = vcmp.eq.f32.partialorder %v1771, 8.507059e+37
      %v1773 = vand.u32 %v1366, 2147483648
      %v1774 = vor.u32 1.1754944e-38, %v1773
      %v1775 = vsel %vm1772, %v1774, %v1770
      %v1776 = vmul.f32 1.0, %v1775
      %v1777 = vrcp.pop %v1367
      %v1778 = vmul.f32 %v1367, %v1777
      %v1779 = vsub.f32 1.0, %v1778
      %v1780 = vmul.f32 %v1777, %v1779
      %v1781 = vadd.f32 %v1777, %v1780
      %vm1782 = vweird.f32 %v1367
      %vm1783 = vweird.f32 %v1777
      %vm1784 = vmor %vm1782, %vm1783
      %v1785 = vsel %vm1784, %v1777, %v1781
      %v1786 = vand.u32 2147483647, %v1367
      %vm1787 = vcmp.eq.f32.partialorder %v1786, 8.507059e+37
      %v1788 = vand.u32 %v1367, 2147483648
      %v1789 = vor.u32 1.1754944e-38, %v1788
      %v1790 = vsel %vm1787, %v1789, %v1785
      %v1791 = vmul.f32 1.0, %v1790
      %v1792 = vrcp.pop %v1368
      %v1793 = vmul.f32 %v1368, %v1792
      %v1794 = vsub.f32 1.0, %v1793
      %v1795 = vmul.f32 %v1792, %v1794
      %v1796 = vadd.f32 %v1792, %v1795
      %vm1797 = vweird.f32 %v1368
      %vm1798 = vweird.f32 %v1792
      %vm1799 = vmor %vm1797, %vm1798
      %v1800 = vsel %vm1799, %v1792, %v1796
      %v1801 = vand.u32 2147483647, %v1368
      %vm1802 = vcmp.eq.f32.partialorder %v1801, 8.507059e+37
      %v1803 = vand.u32 %v1368, 2147483648
      %v1804 = vor.u32 1.1754944e-38, %v1803
      %v1805 = vsel %vm1802, %v1804, %v1800
      %v1806 = vmul.f32 1.0, %v1805
      %v1807 = vrcp.pop %v1369
      %v1808 = vmul.f32 %v1369, %v1807
      %v1809 = vsub.f32 1.0, %v1808
      %v1810 = vmul.f32 %v1807, %v1809
      %v1811 = vadd.f32 %v1807, %v1810
      %vm1812 = vweird.f32 %v1369
      %vm1813 = vweird.f32 %v1807
      %vm1814 = vmor %vm1812, %vm1813
      %v1815 = vsel %vm1814, %v1807, %v1811
      %v1816 = vand.u32 2147483647, %v1369
      %vm1817 = vcmp.eq.f32.partialorder %v1816, 8.507059e+37
      %v1818 = vand.u32 %v1369, 2147483648
      %v1819 = vor.u32 1.1754944e-38, %v1818
      %v1820 = vsel %vm1817, %v1819, %v1815
      %v1821 = vmul.f32 1.0, %v1820
      %v1822 = vrcp.pop %v1370
      %v1823 = vmul.f32 %v1370, %v1822
      %v1824 = vsub.f32 1.0, %v1823
      %v1825 = vmul.f32 %v1822, %v1824
      %v1826 = vadd.f32 %v1822, %v1825
      %vm1827 = vweird.f32 %v1370
      %vm1828 = vweird.f32 %v1822
      %vm1829 = vmor %vm1827, %vm1828
      %v1830 = vsel %vm1829, %v1822, %v1826
      %v1831 = vand.u32 2147483647, %v1370
      %vm1832 = vcmp.eq.f32.partialorder %v1831, 8.507059e+37
      %v1833 = vand.u32 %v1370, 2147483648
      %v1834 = vor.u32 1.1754944e-38, %v1833
      %v1835 = vsel %vm1832, %v1834, %v1830
      %v1836 = vmul.f32 1.0, %v1835
      %v1837 = vrcp.pop %v1371
      %v1838 = vmul.f32 %v1371, %v1837
      %v1839 = vsub.f32 1.0, %v1838
      %v1840 = vmul.f32 %v1837, %v1839
      %v1841 = vadd.f32 %v1837, %v1840
      %vm1842 = vweird.f32 %v1371
      %vm1843 = vweird.f32 %v1837
      %vm1844 = vmor %vm1842, %vm1843
      %v1845 = vsel %vm1844, %v1837, %v1841
      %v1846 = vand.u32 2147483647, %v1371
      %vm1847 = vcmp.eq.f32.partialorder %v1846, 8.507059e+37
      %v1848 = vand.u32 %v1371, 2147483648
      %v1849 = vor.u32 1.1754944e-38, %v1848
      %v1850 = vsel %vm1847, %v1849, %v1845
      %v1851 = vmul.f32 1.0, %v1850
      %v1852 = vmul.f32 %v1156, %v1386
      %v1853 = vmul.f32 %v1205, %v1401
      %v1854 = vmul.f32 %v1158, %v1416
      %v1855 = vmul.f32 %v1207, %v1431
      %v1856 = vmul.f32 %v1161, %v1446
      %v1857 = vmul.f32 %v1210, %v1461
      %v1858 = vmul.f32 %v1163, %v1476
      %v1859 = vmul.f32 %v1212, %v1491
      %v1860 = vmul.f32 %v1166, %v1506
      %v1861 = vmul.f32 %v1215, %v1521
      %v1862 = vmul.f32 %v1168, %v1536
      %v1863 = vmul.f32 %v1217, %v1551
      %v1864 = vmul.f32 %v1171, %v1566
      %v1865 = vmul.f32 %v1220, %v1581
      %v1866 = vmul.f32 %v1173, %v1596
      %v1867 = vmul.f32 %v1222, %v1611
      %v1868 = vmul.f32 %v1176, %v1626
      %v1869 = vmul.f32 %v1225, %v1641
      %v1870 = vmul.f32 %v1178, %v1656
      %v1871 = vmul.f32 %v1227, %v1671
      %v1872 = vmul.f32 %v1181, %v1686
      %v1873 = vmul.f32 %v1230, %v1701
      %v1874 = vmul.f32 %v1183, %v1716
      %v1875 = vmul.f32 %v1232, %v1731
      %v1876 = vmul.f32 %v1186, %v1746
      %v1877 = vmul.f32 %v1235, %v1761
      %v1878 = vmul.f32 %v1188, %v1776
      %v1879 = vmul.f32 %v1237, %v1791
      %v1880 = vmul.f32 %v1191, %v1806
      %v1881 = vmul.f32 %v1240, %v1821
      %v1882 = vmul.f32 %v1193, %v1836
      %v1883 = vmul.f32 %v1242, %v1851
      %v1884 = vld [vmem:[%s7] sm:$0xf]
      %v1885 = vld [vmem:[%s7 + $0x4] sm:$0xf]
      %v1886 = vld [vmem:[%s7 + $0x8] sm:$0xf]
      %v1887 = vld [vmem:[%s7 + $0xc] sm:$0xf]
      %v1888 = vpack.c.bf16 %v1854, %v1852
      %v1889 = vpack.c.bf16 %v1855, %v1853
      %v1890 = vpack.c.bf16 %v1858, %v1856
      %v1891 = vpack.c.bf16 %v1859, %v1857
      %v1892 = vpack.c.bf16 %v1862, %v1860
      %v1893 = vpack.c.bf16 %v1863, %v1861
      %v1894 = vpack.c.bf16 %v1866, %v1864
      %v1895 = vpack.c.bf16 %v1867, %v1865
      %v1896 = vpack.c.bf16 %v1870, %v1868
      %v1897 = vpack.c.bf16 %v1871, %v1869
      %v1898 = vpack.c.bf16 %v1874, %v1872
      %v1899 = vpack.c.bf16 %v1875, %v1873
      %v1900 = vpack.c.bf16 %v1878, %v1876
      %v1901 = vpack.c.bf16 %v1879, %v1877
      %v1902 = vpack.c.bf16 %v1882, %v1880
      %v1903 = vpack.c.bf16 %v1883, %v1881
      %v1908 = vunpack.c.l.b16 %v1884
      %v1909 = vunpack.c.l.b16 %v1885
      %v1910 = vunpack.c.l.b16 %v1886
      %v1911 = vunpack.c.l.b16 %v1887
      %v1912 = vpack.c.b16 %v1909, %v1908
      %v1913 = vpack.c.b16 %v1911, %v1910
      %1916 = vmatpush.bf16.msra.mxu0 %v1902
      %1917 = vmatpush.bf16.msra.mxu0 %v1900
      %1918 = vmatpush.bf16.msra.mxu0 %v1898
      %1919 = vmatpush.bf16.msra.mxu0 %v1896
      %1920 = vmatpush.bf16.msra.mxu0 %v1894
      %1921 = vmatpush.bf16.msra.mxu0 %v1892
      %1922 = vmatpush.bf16.msra.mxu0 %v1890
      %1923 = vmatpush.bf16.msra.mxu0 %v1888
      %1924 = vmatmul.bf16.gmra.mxu0 %v1912
      %v1925 = vpop.f32.mrf.mxu0
      %v1926 = vadd.f32 0.0, %v1925
      %v1927 = vpop.f32.mrf.mxu0
      %v1928 = vadd.f32 0.0, %v1927
      %1929 = vmatmul.bf16.gmra.mxu0 %v1913
      %v1930 = vpop.f32.mrf.mxu0
      %v1931 = vadd.f32 0.0, %v1930
      %v1932 = vpop.f32.mrf.mxu0
      %v1933 = vadd.f32 0.0, %v1932
      %1934 = vdwg.mxu0
      %1935 = vmatpush.bf16.msra.mxu0 %v1903
      %1936 = vmatpush.bf16.msra.mxu0 %v1901
      %1937 = vmatpush.bf16.msra.mxu0 %v1899
      %1938 = vmatpush.bf16.msra.mxu0 %v1897
      %1939 = vmatpush.bf16.msra.mxu0 %v1895
      %1940 = vmatpush.bf16.msra.mxu0 %v1893
      %1941 = vmatpush.bf16.msra.mxu0 %v1891
      %1942 = vmatpush.bf16.msra.mxu0 %v1889
      %1943 = vmatmul.bf16.gmra.mxu0 %v1912
      %v1944 = vpop.f32.mrf.mxu0
      %v1945 = vadd.f32 0.0, %v1944
      %v1946 = vpop.f32.mrf.mxu0
      %v1947 = vadd.f32 0.0, %v1946
      %1948 = vmatmul.bf16.gmra.mxu0 %v1913
      %v1949 = vpop.f32.mrf.mxu0
      %v1950 = vadd.f32 0.0, %v1949
      %v1951 = vpop.f32.mrf.mxu0
      %v1952 = vadd.f32 0.0, %v1951
      %1953 = vdwg.mxu0
      %v1954 = vadd.f32 %v1054, %v1926
      %v1955 = vadd.f32 %v1055, %v1945
      %v1956 = vadd.f32 %v1056, %v1928
      %v1957 = vadd.f32 %v1057, %v1947
      %v1958 = vadd.f32 %v1058, %v1931
      %v1959 = vadd.f32 %v1059, %v1950
      %v1960 = vadd.f32 %v1060, %v1933
      %v1961 = vadd.f32 %v1061, %v1952
      %v1962 = vld [vmem:[%s8] sm:$0x3]
      %v1963 = vpack.c.bf16 %v1956, %v1954
      %v1964 = vpack.c.bf16 %v1957, %v1955
      %v1965 = vpack.c.bf16 %v1960, %v1958
      %v1966 = vpack.c.bf16 %v1961, %v1959
      %v1968 = vsel %vm804, %v1962, 0
      %1970 = vmatpush.bf16.msra.mxu0 0
      %1971 = vmatpush.bf16.msra.mxu0 0
      %1972 = vmatpush.bf16.msra.mxu0 0
      %1973 = vmatpush.bf16.msra.mxu0 0
      %1974 = vmatpush.bf16.msra.mxu0 0
      %1975 = vmatpush.bf16.msra.mxu0 0
      %1976 = vmatpush.bf16.msra.mxu0 %v1965
      %1977 = vmatpush.bf16.msra.mxu0 %v1963
      %1978 = vmatmul.bf16.gmra.mxu0 %v1968
      %v1979 = vpop.f32.mrf.mxu0
      %v1980 = vadd.f32 0.0, %v1979
      %v1981 = vpop.f32.mrf.mxu0
      %1982 = vdwg.mxu0
      %1983 = vmatpush.bf16.msra.mxu0 0
      %1984 = vmatpush.bf16.msra.mxu0 0
      %1985 = vmatpush.bf16.msra.mxu0 0
      %1986 = vmatpush.bf16.msra.mxu0 0
      %1987 = vmatpush.bf16.msra.mxu0 0
      %1988 = vmatpush.bf16.msra.mxu0 0
      %1989 = vmatpush.bf16.msra.mxu0 %v1966
      %1990 = vmatpush.bf16.msra.mxu0 %v1964
      %1991 = vmatmul.bf16.gmra.mxu0 %v1968
      %v1992 = vpop.f32.mrf.mxu0
      %v1993 = vadd.f32 0.0, %v1992
      %v1994 = vpop.f32.mrf.mxu0
      %1995 = vdwg.mxu0
      %v1998 = vrot.slane %v1993, 4
      %v1999 = vsel %vm525, %v1980, %v1998
      %2001 = vst [vmem:[%s427] sm:$0xff] %v1999
      %s2002 = smul.u32 2, %s25
      %p2003 = scmp.lt.s32.totalorder %s24, 1
      %s2004 = scalar_select %p2003, %s24, 1
      %p2005 = scmp.lt.s32.totalorder %s2002, 1
      %s2006 = scalar_select %p2005, %s2002, 1
      %s2007 = smul.addr %s2004, 2
      %s2008 = sadd.s32 %s2006, %s2007
      %s2009 = smul.addr %s2008, 4
      %s2010 = scalar_lea.vmem %s9, %s2009
      // Predicated region
      $region57: #{controlnet_wrapper_forward.1} parent=55 // pred_check
        %p2011 = pneg %p263
      $region58: #{controlnet_wrapper_forward.1} parent=55 // pred_check_branch
        %2013 = sbr.rel (%p2011) target = $region60
      $region59: #{controlnet_wrapper_forward.1} parent=55 // pred_region
        %s2014 = smul.u32 2, %s25
      $region60: #{controlnet_wrapper_forward.1} parent=55 // pred_fallthru
        _
    $region56: #{controlnet_wrapper_forward.1} parent=5 // pred_fallthru
      _
    %p2015 = scmp.le.s32.totalorder 2, %s15
    // Predicated region
    $region61: #{controlnet_wrapper_forward.1} parent=5 // pred_check
      %p2016 = pneg %p2015
    $region62: #{controlnet_wrapper_forward.1} parent=5 // pred_check_branch
      %2018 = sbr.rel (%p2016) target = $region64
    $region63: #{controlnet_wrapper_forward.1} parent=5 // pred_region
      %s2019 = ssub.s32 %s15, 2
      // Predicated region
      $region65: #{controlnet_wrapper_forward.1} parent=63 // pred_check
        %p2020 = pneg %p269
      $region66: #{controlnet_wrapper_forward.1} parent=63 // pred_check_branch
        %2022 = sbr.rel (%p2020) target = $region68
      $region67: #{controlnet_wrapper_forward.1} parent=63 // pred_region
        %s2023 = smul.u32 2, %s27
        %p2024 = scmp.lt.s32.totalorder %s26, 1
        %s2025 = scalar_select %p2024, %s26, 1
        %p2026 = scmp.lt.s32.totalorder %s2023, 1
        %s2027 = scalar_select %p2026, %s2023, 1
        %s2028 = smul.addr %s2025, 2
        %s2029 = sadd.s32 %s2027, %s2028
        %s2030 = smul.addr %s2029, 4
        %s2031 = scalar_lea.vmem %s9, %s2030
      $region68: #{controlnet_wrapper_forward.1} parent=63 // pred_fallthru
        _
    $region64: #{controlnet_wrapper_forward.1} parent=5 // pred_fallthru
      _
  $region6: #{controlnet_wrapper_forward.1} parent=0 // loop_footer
    %s19 = sadd.s32 1, %s15
  $region7: #{controlnet_wrapper_forward.1} parent=0 // loop_footer_branch
    %14 = sbr.rel target = $region3
  $region8: #{controlnet_wrapper_forward.1} parent=0 // loop_exit
    _

</llo_original>
